<compile_context>
chip_gen: v6e
topology: v6e:2x2x1
jax: 0.10.0
libtpu: 0.0.40
codegen_flags: <defaults>
</compile_context>

<pallas_src>
import functools

import jax
import jax.numpy as jnp
from jax.experimental import pallas as pl
from jax.experimental.pallas import tpu as pltpu

LATENT = 64
D_INERTIAL = 201 * 6     # 1206
D_LEG = 900
D_FEET = 500
H1 = 128                 # first hidden width of each encoder
H2 = 32                  # second hidden width of each encoder


def _round_up(x, m):
    return (x + m - 1) // m * m


def _proprio_kernel(x_i_ref, x_l_ref, x_f_ref,
                    w1i_ref, w2i_ref, b2i_ref,
                    w1l_ref, w2l_ref, b2l_ref,
                    w1f_ref, w2f_ref, b2f_ref,
                    wfc1a_ref, wfc1b_ref, wfc1c_ref, bfc1_ref,
                    wfc2_ref, bfc2_ref,
                    out_ref):
    """Fused forward pass for one batch tile."""

    def encoder(x_ref, w1_ref, w2_ref, b2_ref):
        # Cast raw f32 inputs to bf16 just before the MXU (VALU has slack);
        # f32 accumulation keeps bias/ReLU math in f32.
        x = x_ref[...].astype(jnp.bfloat16)
        h = jnp.dot(x, w1_ref[...], preferred_element_type=jnp.float32)   # Linear (bias=False)
        h = jnp.maximum(h, 0.0)                                            # ReLU
        # Dropout(p=0.05) -> identity at inference.
        h = jnp.dot(h.astype(jnp.bfloat16), w2_ref[...],
                    preferred_element_type=jnp.float32) + b2_ref[...]      # Linear (+bias)
        return jnp.maximum(h, 0.0)                                         # ReLU

    hi = encoder(x_i_ref, w1i_ref, w2i_ref, b2i_ref)   # (tm, 32)
    hl = encoder(x_l_ref, w1l_ref, w2l_ref, b2l_ref)   # (tm, 32)
    hf = encoder(x_f_ref, w1f_ref, w2f_ref, b2f_ref)   # (tm, 32)

    # fc[0]: concat([hi, hl, hf], -1) @ W_fc1 + b_fc1
    #      == hi @ W_fc1[0:32] + hl @ W_fc1[32:64] + hf @ W_fc1[64:96] + b_fc1
    z = (jnp.dot(hi.astype(jnp.bfloat16), wfc1a_ref[...],
                 preferred_element_type=jnp.float32)
         + jnp.dot(hl.astype(jnp.bfloat16), wfc1b_ref[...],
                   preferred_element_type=jnp.float32)
         + jnp.dot(hf.astype(jnp.bfloat16), wfc1c_ref[...],
                   preferred_element_type=jnp.float32)
         + bfc1_ref[...])
    z = jnp.maximum(z, 0.0)                                                # ReLU

    # fc[2]: Linear(64 -> 64)
    feat = jnp.dot(z.astype(jnp.bfloat16), wfc2_ref[...],
                   preferred_element_type=jnp.float32) + bfc2_ref[...]

    # F.normalize(dim=-1): x * rsqrt(max(sum(x^2), eps^2)), eps = 1e-12.
    sumsq = jnp.sum(feat * feat, axis=-1, keepdims=True)
    out_ref[...] = feat * jax.lax.rsqrt(jnp.maximum(sumsq, 1e-24))


@functools.partial(jax.jit, static_argnames=("tile_m",))
def proprioception_forward(inertial, leg, feet, prep, *, tile_m=1024):
    """inertial: (B, 201, 6) or (B, 1206); leg: (B, 900); feet: (B, 500).

    `prep` is the output of prepare_params() (bf16 weights, split fc1)."""
    B = inertial.shape[0]
    # Row-major flatten is a free reshape (no HBM copy under jit).
    x_i = inertial.reshape(B, D_INERTIAL)
    x_l = leg.reshape(B, D_LEG)
    x_f = feet.reshape(B, D_FEET)

    if B <= 8:
        tm = B                                           # one block; block == full batch dim
    else:
        # >= 2 grid steps so ("parallel",) shards across both v7x TensorCores.
        tm = min(tile_m, _round_up(pl.cdiv(B, 2), 8))
    grid = pl.cdiv(B, tm)                                # partial last block is masked by Pallas

    weights = (
        prep["w1i"], prep["w2i"], prep["b2i"],
        prep["w1l"], prep["w2l"], prep["b2l"],
        prep["w1f"], prep["w2f"], prep["b2f"],
        prep["wfc1a"], prep["wfc1b"], prep["wfc1c"], prep["bfc1"],
        prep["wfc2"], prep["bfc2"],
    )

    def x_spec(d):
        return pl.BlockSpec((tm, d), lambda i: (i, 0))   # batch-tiled, full feature dim

    def w_spec(w):
        return pl.BlockSpec(w.shape, lambda i: (0, 0))   # weight-resident across steps

    out = pl.pallas_call(
        _proprio_kernel,
        out_shape=jax.ShapeDtypeStruct((B, LATENT), jnp.float32),
        grid=(grid,),
        in_specs=[x_spec(D_INERTIAL), x_spec(D_LEG), x_spec(D_FEET)]
                 + [w_spec(w) for w in weights],
        out_specs=pl.BlockSpec((tm, LATENT), lambda i: (i, 0)),
        compiler_params=pltpu.CompilerParams(
            dimension_semantics=("parallel",),
            vmem_limit_bytes=40 * 1024 * 1024),
    )(x_i, x_l, x_f, *weights)
    return out


def init_params(key):
    """Deterministic synthetic parameters, stored as (in_features, out_features)."""
    ks = jax.random.split(key, 13)

    def w(k, shape, scale=0.05):
        return (scale * jax.random.normal(k, shape)).astype(jnp.float32)

    return {
        # inertial encoder
        "w1i": w(ks[0], (D_INERTIAL, H1)), "w2i": w(ks[1], (H1, H2)), "b2i": w(ks[2], (1, H2)),
        # leg encoder
        "w1l": w(ks[3], (D_LEG, H1)), "w2l": w(ks[4], (H1, H2)), "b2l": w(ks[5], (1, H2)),
        # feet encoder
        "w1f": w(ks[6], (D_FEET, H1)), "w2f": w(ks[7], (H1, H2)), "b2f": w(ks[8], (1, H2)),
        # fc head: Linear(96, 64), Linear(64, 64)
        "wfc1": w(ks[9], (3 * H2, LATENT)), "bfc1": w(ks[10], (1, LATENT)),
        "wfc2": w(ks[11], (LATENT, LATENT)), "bfc2": w(ks[12], (1, LATENT)),
    }


def prepare_params(p):
    """One-time host-side prep: cast matmul weights to bf16 (biases stay f32 —
    they add into the f32 accumulator) and row-split W_fc1 into three (32,64)
    slabs so the concat-matmul becomes three small dots (no VMEM scratch)."""
    bf16 = lambda a: a.astype(jnp.bfloat16)
    f32 = lambda a: a.astype(jnp.float32)
    return {
        "w1i": bf16(p["w1i"]), "w2i": bf16(p["w2i"]), "b2i": f32(p["b2i"]),
        "w1l": bf16(p["w1l"]), "w2l": bf16(p["w2l"]), "b2l": f32(p["b2l"]),
        "w1f": bf16(p["w1f"]), "w2f": bf16(p["w2f"]), "b2f": f32(p["b2f"]),
        "wfc1a": bf16(p["wfc1"][0:H2]),
        "wfc1b": bf16(p["wfc1"][H2:2 * H2]),
        "wfc1c": bf16(p["wfc1"][2 * H2:3 * H2]),
        "bfc1": f32(p["bfc1"]),
        "wfc2": bf16(p["wfc2"]), "bfc2": f32(p["bfc2"]),
    }


def _reference_forward(inertial, leg, feet, p):
    """Pure-JAX f32 reference for correctness checking."""
    B = inertial.shape[0]

    def enc(x, w1, w2, b2):
        h = jnp.maximum(x.reshape(B, -1) @ w1, 0.0)
        return jnp.maximum(h @ w2 + b2, 0.0)

    hi = enc(inertial, p["w1i"], p["w2i"], p["b2i"])
    hl = enc(leg, p["w1l"], p["w2l"], p["b2l"])
    hf = enc(feet, p["w1f"], p["w2f"], p["b2f"])
    z = jnp.maximum(jnp.concatenate([hi, hl, hf], axis=1) @ p["wfc1"] + p["bfc1"], 0.0)
    feat = z @ p["wfc2"] + p["bfc2"]
    n = jnp.sqrt(jnp.sum(feat * feat, axis=-1, keepdims=True))
    return feat / jnp.maximum(n, 1e-12)


if __name__ == "__main__":
    key = jax.random.PRNGKey(0)
    k_in, k_leg, k_feet, k_param = jax.random.split(key, 4)

    B = 2
    inertial = jax.random.normal(k_in, (B, 201, 6), dtype=jnp.float32)
    leg = jax.random.normal(k_leg, (B, 900), dtype=jnp.float32)
    feet = jax.random.normal(k_feet, (B, 500), dtype=jnp.float32)

    params = init_params(k_param)
    prep = prepare_params(params)

    out = proprioception_forward(inertial, leg, feet, prep)
    out = jax.block_until_ready(out)

    ref = _reference_forward(inertial, leg, feet, params)
    assert out.shape == (B, LATENT)
    max_err = float(jnp.max(jnp.abs(out - ref)))
    # bf16 weights/activations vs f32 reference: loose tolerance is intentional.
    assert jnp.allclose(out, ref, rtol=3e-2, atol=3e-2), \
        f"mismatch vs JAX reference (max |err| = {max_err})"

    print("KERNEL_OK")
</pallas_src>

<mosaic_0001>
module attributes {stable_mosaic.version = 11 : i64} {
  func.func @_proprio_kernel(%arg0: i32, %arg1: memref<2x1206xf32, #tpu.memory_space<vmem>>, %arg2: memref<2x900xf32, #tpu.memory_space<vmem>>, %arg3: memref<2x500xf32, #tpu.memory_space<vmem>>, %arg4: memref<1206x128xbf16, #tpu.memory_space<vmem>>, %arg5: memref<128x32xbf16, #tpu.memory_space<vmem>>, %arg6: memref<1x32xf32, #tpu.memory_space<vmem>>, %arg7: memref<900x128xbf16, #tpu.memory_space<vmem>>, %arg8: memref<128x32xbf16, #tpu.memory_space<vmem>>, %arg9: memref<1x32xf32, #tpu.memory_space<vmem>>, %arg10: memref<500x128xbf16, #tpu.memory_space<vmem>>, %arg11: memref<128x32xbf16, #tpu.memory_space<vmem>>, %arg12: memref<1x32xf32, #tpu.memory_space<vmem>>, %arg13: memref<32x64xbf16, #tpu.memory_space<vmem>>, %arg14: memref<32x64xbf16, #tpu.memory_space<vmem>>, %arg15: memref<32x64xbf16, #tpu.memory_space<vmem>>, %arg16: memref<1x64xf32, #tpu.memory_space<vmem>>, %arg17: memref<64x64xbf16, #tpu.memory_space<vmem>>, %arg18: memref<1x64xf32, #tpu.memory_space<vmem>>, %arg19: memref<2x64xf32, #tpu.memory_space<vmem>>) attributes {dimension_semantics = [#tpu.dimension_semantics<parallel>], iteration_bounds = array<i64: 1>, scalar_prefetch = 0 : i64, scratch_operands = 0 : i64, tpu.core_type = #tpu.core_type<tc>, window_params = [{transform_indices = @transform_0, window_bounds = array<i64: 2, 1206>}, {transform_indices = @transform_1, window_bounds = array<i64: 2, 900>}, {transform_indices = @transform_2, window_bounds = array<i64: 2, 500>}, {pipeline_mode = #tpu.pipeline_mode<synchronous>, transform_indices = @transform_3, window_bounds = array<i64: 1206, 128>}, {pipeline_mode = #tpu.pipeline_mode<synchronous>, transform_indices = @transform_4, window_bounds = array<i64: 128, 32>}, {pipeline_mode = #tpu.pipeline_mode<synchronous>, transform_indices = @transform_5, window_bounds = array<i64: 1, 32>}, {pipeline_mode = #tpu.pipeline_mode<synchronous>, transform_indices = @transform_6, window_bounds = array<i64: 900, 128>}, {pipeline_mode = #tpu.pipeline_mode<synchronous>, transform_indices = @transform_7, window_bounds = array<i64: 128, 32>}, {pipeline_mode = #tpu.pipeline_mode<synchronous>, transform_indices = @transform_8, window_bounds = array<i64: 1, 32>}, {pipeline_mode = #tpu.pipeline_mode<synchronous>, transform_indices = @transform_9, window_bounds = array<i64: 500, 128>}, {pipeline_mode = #tpu.pipeline_mode<synchronous>, transform_indices = @transform_10, window_bounds = array<i64: 128, 32>}, {pipeline_mode = #tpu.pipeline_mode<synchronous>, transform_indices = @transform_11, window_bounds = array<i64: 1, 32>}, {pipeline_mode = #tpu.pipeline_mode<synchronous>, transform_indices = @transform_12, window_bounds = array<i64: 32, 64>}, {pipeline_mode = #tpu.pipeline_mode<synchronous>, transform_indices = @transform_13, window_bounds = array<i64: 32, 64>}, {pipeline_mode = #tpu.pipeline_mode<synchronous>, transform_indices = @transform_14, window_bounds = array<i64: 32, 64>}, {pipeline_mode = #tpu.pipeline_mode<synchronous>, transform_indices = @transform_15, window_bounds = array<i64: 1, 64>}, {pipeline_mode = #tpu.pipeline_mode<synchronous>, transform_indices = @transform_16, window_bounds = array<i64: 64, 64>}, {pipeline_mode = #tpu.pipeline_mode<synchronous>, transform_indices = @transform_17, window_bounds = array<i64: 1, 64>}, {transform_indices = @transform_18, window_bounds = array<i64: 2, 64>}]} {
    %c0 = arith.constant 0 : index
    %c0_0 = arith.constant 0 : index
    %0 = vector.load %arg1[%c0, %c0_0] : memref<2x1206xf32, #tpu.memory_space<vmem>>, vector<2x1206xf32>
    %1 = arith.truncf %0 : vector<2x1206xf32> to vector<2x1206xbf16>
    %c0_1 = arith.constant 0 : index
    %c0_2 = arith.constant 0 : index
    %2 = vector.load %arg4[%c0_1, %c0_2] : memref<1206x128xbf16, #tpu.memory_space<vmem>>, vector<1206x128xbf16>
    %cst = arith.constant dense<0.000000e+00> : vector<2x128xf32>
    %3 = tpu.matmul %1, %2, %cst {dimension_numbers = #tpu.dot_dimension_numbers<[1], [0], [0], [1], [0, 0, 1, 1], [], []>} : vector<2x1206xbf16>, vector<1206x128xbf16>, vector<2x128xf32> -> vector<2x128xf32>
    %cst_3 = arith.constant 0.000000e+00 : f32
    %4 = vector.broadcast %cst_3 : f32 to vector<2x128xf32>
    %5 = arith.maximumf %3, %4 : vector<2x128xf32>
    %6 = arith.truncf %5 : vector<2x128xf32> to vector<2x128xbf16>
    %c0_4 = arith.constant 0 : index
    %c0_5 = arith.constant 0 : index
    %7 = vector.load %arg5[%c0_4, %c0_5] : memref<128x32xbf16, #tpu.memory_space<vmem>>, vector<128x32xbf16>
    %cst_6 = arith.constant dense<0.000000e+00> : vector<2x32xf32>
    %8 = tpu.matmul %6, %7, %cst_6 {dimension_numbers = #tpu.dot_dimension_numbers<[1], [0], [0], [1], [0, 0, 1, 1], [], []>} : vector<2x128xbf16>, vector<128x32xbf16>, vector<2x32xf32> -> vector<2x32xf32>
    %c0_7 = arith.constant 0 : index
    %c0_8 = arith.constant 0 : index
    %9 = vector.load %arg6[%c0_7, %c0_8] : memref<1x32xf32, #tpu.memory_space<vmem>>, vector<1x32xf32>
    %10 = vector.broadcast %9 : vector<1x32xf32> to vector<2x32xf32>
    %11 = arith.addf %8, %10 : vector<2x32xf32>
    %cst_9 = arith.constant 0.000000e+00 : f32
    %12 = vector.broadcast %cst_9 : f32 to vector<2x32xf32>
    %13 = arith.maximumf %11, %12 : vector<2x32xf32>
    %c0_10 = arith.constant 0 : index
    %c0_11 = arith.constant 0 : index
    %14 = vector.load %arg2[%c0_10, %c0_11] : memref<2x900xf32, #tpu.memory_space<vmem>>, vector<2x900xf32>
    %15 = arith.truncf %14 : vector<2x900xf32> to vector<2x900xbf16>
    %c0_12 = arith.constant 0 : index
    %c0_13 = arith.constant 0 : index
    %16 = vector.load %arg7[%c0_12, %c0_13] : memref<900x128xbf16, #tpu.memory_space<vmem>>, vector<900x128xbf16>
    %cst_14 = arith.constant dense<0.000000e+00> : vector<2x128xf32>
    %17 = tpu.matmul %15, %16, %cst_14 {dimension_numbers = #tpu.dot_dimension_numbers<[1], [0], [0], [1], [0, 0, 1, 1], [], []>} : vector<2x900xbf16>, vector<900x128xbf16>, vector<2x128xf32> -> vector<2x128xf32>
    %cst_15 = arith.constant 0.000000e+00 : f32
    %18 = vector.broadcast %cst_15 : f32 to vector<2x128xf32>
    %19 = arith.maximumf %17, %18 : vector<2x128xf32>
    %20 = arith.truncf %19 : vector<2x128xf32> to vector<2x128xbf16>
    %c0_16 = arith.constant 0 : index
    %c0_17 = arith.constant 0 : index
    %21 = vector.load %arg8[%c0_16, %c0_17] : memref<128x32xbf16, #tpu.memory_space<vmem>>, vector<128x32xbf16>
    %cst_18 = arith.constant dense<0.000000e+00> : vector<2x32xf32>
    %22 = tpu.matmul %20, %21, %cst_18 {dimension_numbers = #tpu.dot_dimension_numbers<[1], [0], [0], [1], [0, 0, 1, 1], [], []>} : vector<2x128xbf16>, vector<128x32xbf16>, vector<2x32xf32> -> vector<2x32xf32>
    %c0_19 = arith.constant 0 : index
    %c0_20 = arith.constant 0 : index
    %23 = vector.load %arg9[%c0_19, %c0_20] : memref<1x32xf32, #tpu.memory_space<vmem>>, vector<1x32xf32>
    %24 = vector.broadcast %23 : vector<1x32xf32> to vector<2x32xf32>
    %25 = arith.addf %22, %24 : vector<2x32xf32>
    %cst_21 = arith.constant 0.000000e+00 : f32
    %26 = vector.broadcast %cst_21 : f32 to vector<2x32xf32>
    %27 = arith.maximumf %25, %26 : vector<2x32xf32>
    %c0_22 = arith.constant 0 : index
    %c0_23 = arith.constant 0 : index
    %28 = vector.load %arg3[%c0_22, %c0_23] : memref<2x500xf32, #tpu.memory_space<vmem>>, vector<2x500xf32>
    %29 = arith.truncf %28 : vector<2x500xf32> to vector<2x500xbf16>
    %c0_24 = arith.constant 0 : index
    %c0_25 = arith.constant 0 : index
    %30 = vector.load %arg10[%c0_24, %c0_25] : memref<500x128xbf16, #tpu.memory_space<vmem>>, vector<500x128xbf16>
    %cst_26 = arith.constant dense<0.000000e+00> : vector<2x128xf32>
    %31 = tpu.matmul %29, %30, %cst_26 {dimension_numbers = #tpu.dot_dimension_numbers<[1], [0], [0], [1], [0, 0, 1, 1], [], []>} : vector<2x500xbf16>, vector<500x128xbf16>, vector<2x128xf32> -> vector<2x128xf32>
    %cst_27 = arith.constant 0.000000e+00 : f32
    %32 = vector.broadcast %cst_27 : f32 to vector<2x128xf32>
    %33 = arith.maximumf %31, %32 : vector<2x128xf32>
    %34 = arith.truncf %33 : vector<2x128xf32> to vector<2x128xbf16>
    %c0_28 = arith.constant 0 : index
    %c0_29 = arith.constant 0 : index
    %35 = vector.load %arg11[%c0_28, %c0_29] : memref<128x32xbf16, #tpu.memory_space<vmem>>, vector<128x32xbf16>
    %cst_30 = arith.constant dense<0.000000e+00> : vector<2x32xf32>
    %36 = tpu.matmul %34, %35, %cst_30 {dimension_numbers = #tpu.dot_dimension_numbers<[1], [0], [0], [1], [0, 0, 1, 1], [], []>} : vector<2x128xbf16>, vector<128x32xbf16>, vector<2x32xf32> -> vector<2x32xf32>
    %c0_31 = arith.constant 0 : index
    %c0_32 = arith.constant 0 : index
    %37 = vector.load %arg12[%c0_31, %c0_32] : memref<1x32xf32, #tpu.memory_space<vmem>>, vector<1x32xf32>
    %38 = vector.broadcast %37 : vector<1x32xf32> to vector<2x32xf32>
    %39 = arith.addf %36, %38 : vector<2x32xf32>
    %cst_33 = arith.constant 0.000000e+00 : f32
    %40 = vector.broadcast %cst_33 : f32 to vector<2x32xf32>
    %41 = arith.maximumf %39, %40 : vector<2x32xf32>
    %42 = arith.truncf %13 : vector<2x32xf32> to vector<2x32xbf16>
    %c0_34 = arith.constant 0 : index
    %c0_35 = arith.constant 0 : index
    %43 = vector.load %arg13[%c0_34, %c0_35] : memref<32x64xbf16, #tpu.memory_space<vmem>>, vector<32x64xbf16>
    %cst_36 = arith.constant dense<0.000000e+00> : vector<2x64xf32>
    %44 = tpu.matmul %42, %43, %cst_36 {dimension_numbers = #tpu.dot_dimension_numbers<[1], [0], [0], [1], [0, 0, 1, 1], [], []>} : vector<2x32xbf16>, vector<32x64xbf16>, vector<2x64xf32> -> vector<2x64xf32>
    %45 = arith.truncf %27 : vector<2x32xf32> to vector<2x32xbf16>
    %c0_37 = arith.constant 0 : index
    %c0_38 = arith.constant 0 : index
    %46 = vector.load %arg14[%c0_37, %c0_38] : memref<32x64xbf16, #tpu.memory_space<vmem>>, vector<32x64xbf16>
    %cst_39 = arith.constant dense<0.000000e+00> : vector<2x64xf32>
    %47 = tpu.matmul %45, %46, %cst_39 {dimension_numbers = #tpu.dot_dimension_numbers<[1], [0], [0], [1], [0, 0, 1, 1], [], []>} : vector<2x32xbf16>, vector<32x64xbf16>, vector<2x64xf32> -> vector<2x64xf32>
    %48 = arith.addf %44, %47 : vector<2x64xf32>
    %49 = arith.truncf %41 : vector<2x32xf32> to vector<2x32xbf16>
    %c0_40 = arith.constant 0 : index
    %c0_41 = arith.constant 0 : index
    %50 = vector.load %arg15[%c0_40, %c0_41] : memref<32x64xbf16, #tpu.memory_space<vmem>>, vector<32x64xbf16>
    %cst_42 = arith.constant dense<0.000000e+00> : vector<2x64xf32>
    %51 = tpu.matmul %49, %50, %cst_42 {dimension_numbers = #tpu.dot_dimension_numbers<[1], [0], [0], [1], [0, 0, 1, 1], [], []>} : vector<2x32xbf16>, vector<32x64xbf16>, vector<2x64xf32> -> vector<2x64xf32>
    %52 = arith.addf %48, %51 : vector<2x64xf32>
    %c0_43 = arith.constant 0 : index
    %c0_44 = arith.constant 0 : index
    %53 = vector.load %arg16[%c0_43, %c0_44] : memref<1x64xf32, #tpu.memory_space<vmem>>, vector<1x64xf32>
    %54 = vector.broadcast %53 : vector<1x64xf32> to vector<2x64xf32>
    %55 = arith.addf %52, %54 : vector<2x64xf32>
    %cst_45 = arith.constant 0.000000e+00 : f32
    %56 = vector.broadcast %cst_45 : f32 to vector<2x64xf32>
    %57 = arith.maximumf %55, %56 : vector<2x64xf32>
    %58 = arith.truncf %57 : vector<2x64xf32> to vector<2x64xbf16>
    %c0_46 = arith.constant 0 : index
    %c0_47 = arith.constant 0 : index
    %59 = vector.load %arg17[%c0_46, %c0_47] : memref<64x64xbf16, #tpu.memory_space<vmem>>, vector<64x64xbf16>
    %cst_48 = arith.constant dense<0.000000e+00> : vector<2x64xf32>
    %60 = tpu.matmul %58, %59, %cst_48 {dimension_numbers = #tpu.dot_dimension_numbers<[1], [0], [0], [1], [0, 0, 1, 1], [], []>} : vector<2x64xbf16>, vector<64x64xbf16>, vector<2x64xf32> -> vector<2x64xf32>
    %c0_49 = arith.constant 0 : index
    %c0_50 = arith.constant 0 : index
    %61 = vector.load %arg18[%c0_49, %c0_50] : memref<1x64xf32, #tpu.memory_space<vmem>>, vector<1x64xf32>
    %62 = vector.broadcast %61 : vector<1x64xf32> to vector<2x64xf32>
    %63 = arith.addf %60, %62 : vector<2x64xf32>
    %64 = arith.mulf %63, %63 : vector<2x64xf32>
    %cst_51 = arith.constant dense<0.000000e+00> : vector<2xf32>
    %65 = vector.multi_reduction <add>, %64, %cst_51 [1] : vector<2x64xf32> to vector<2xf32>
    %66 = vector.shape_cast %65 : vector<2xf32> to vector<2x1xf32>
    %cst_52 = arith.constant 1.000000e-24 : f32
    %67 = vector.broadcast %cst_52 : f32 to vector<2x1xf32>
    %68 = arith.maximumf %66, %67 : vector<2x1xf32>
    %69 = math.rsqrt %68 : vector<2x1xf32>
    %70 = vector.broadcast %69 : vector<2x1xf32> to vector<2x64xf32>
    %71 = arith.mulf %63, %70 : vector<2x64xf32>
    %c0_53 = arith.constant 0 : index
    %c0_54 = arith.constant 0 : index
    %72 = vector.load %arg19[%c0_53, %c0_54] : memref<2x64xf32, #tpu.memory_space<vmem>>, vector<2x64xf32>
    tpu.vector_store %arg19[%c0_53, %c0_54], %71 {strides = array<i32>} : memref<2x64xf32, #tpu.memory_space<vmem>>, vector<2x64xf32>,
    return
  }
  func.func @transform_0(%arg0: i32) -> (i32, i32) {
    %c0_i32 = arith.constant 0 : i32
    %c0_i32_0 = arith.constant 0 : i32
    return %arg0, %c0_i32 : i32, i32
  }
  func.func @transform_1(%arg0: i32) -> (i32, i32) {
    %c0_i32 = arith.constant 0 : i32
    %c0_i32_0 = arith.constant 0 : i32
    return %arg0, %c0_i32 : i32, i32
  }
  func.func @transform_2(%arg0: i32) -> (i32, i32) {
    %c0_i32 = arith.constant 0 : i32
    %c0_i32_0 = arith.constant 0 : i32
    return %arg0, %c0_i32 : i32, i32
  }
  func.func @transform_3(%arg0: i32) -> (i32, i32) {
    %c0_i32 = arith.constant 0 : i32
    %c0_i32_0 = arith.constant 0 : i32
    %c0_i32_1 = arith.constant 0 : i32
    return %c0_i32, %c0_i32_0 : i32, i32
  }
  func.func @transform_4(%arg0: i32) -> (i32, i32) {
    %c0_i32 = arith.constant 0 : i32
    %c0_i32_0 = arith.constant 0 : i32
    %c0_i32_1 = arith.constant 0 : i32
    return %c0_i32, %c0_i32_0 : i32, i32
  }
  func.func @transform_5(%arg0: i32) -> (i32, i32) {
    %c0_i32 = arith.constant 0 : i32
    %c0_i32_0 = arith.constant 0 : i32
    %c0_i32_1 = arith.constant 0 : i32
    return %c0_i32, %c0_i32_0 : i32, i32
  }
  func.func @transform_6(%arg0: i32) -> (i32, i32) {
    %c0_i32 = arith.constant 0 : i32
    %c0_i32_0 = arith.constant 0 : i32
    %c0_i32_1 = arith.constant 0 : i32
    return %c0_i32, %c0_i32_0 : i32, i32
  }
  func.func @transform_7(%arg0: i32) -> (i32, i32) {
    %c0_i32 = arith.constant 0 : i32
    %c0_i32_0 = arith.constant 0 : i32
    %c0_i32_1 = arith.constant 0 : i32
    return %c0_i32, %c0_i32_0 : i32, i32
  }
  func.func @transform_8(%arg0: i32) -> (i32, i32) {
    %c0_i32 = arith.constant 0 : i32
    %c0_i32_0 = arith.constant 0 : i32
    %c0_i32_1 = arith.constant 0 : i32
    return %c0_i32, %c0_i32_0 : i32, i32
  }
  func.func @transform_9(%arg0: i32) -> (i32, i32) {
    %c0_i32 = arith.constant 0 : i32
    %c0_i32_0 = arith.constant 0 : i32
    %c0_i32_1 = arith.constant 0 : i32
    return %c0_i32, %c0_i32_0 : i32, i32
  }
  func.func @transform_10(%arg0: i32) -> (i32, i32) {
    %c0_i32 = arith.constant 0 : i32
    %c0_i32_0 = arith.constant 0 : i32
    %c0_i32_1 = arith.constant 0 : i32
    return %c0_i32, %c0_i32_0 : i32, i32
  }
  func.func @transform_11(%arg0: i32) -> (i32, i32) {
    %c0_i32 = arith.constant 0 : i32
    %c0_i32_0 = arith.constant 0 : i32
    %c0_i32_1 = arith.constant 0 : i32
    return %c0_i32, %c0_i32_0 : i32, i32
  }
  func.func @transform_12(%arg0: i32) -> (i32, i32) {
    %c0_i32 = arith.constant 0 : i32
    %c0_i32_0 = arith.constant 0 : i32
    %c0_i32_1 = arith.constant 0 : i32
    return %c0_i32, %c0_i32_0 : i32, i32
  }
  func.func @transform_13(%arg0: i32) -> (i32, i32) {
    %c0_i32 = arith.constant 0 : i32
    %c0_i32_0 = arith.constant 0 : i32
    %c0_i32_1 = arith.constant 0 : i32
    return %c0_i32, %c0_i32_0 : i32, i32
  }
  func.func @transform_14(%arg0: i32) -> (i32, i32) {
    %c0_i32 = arith.constant 0 : i32
    %c0_i32_0 = arith.constant 0 : i32
    %c0_i32_1 = arith.constant 0 : i32
    return %c0_i32, %c0_i32_0 : i32, i32
  }
  func.func @transform_15(%arg0: i32) -> (i32, i32) {
    %c0_i32 = arith.constant 0 : i32
    %c0_i32_0 = arith.constant 0 : i32
    %c0_i32_1 = arith.constant 0 : i32
    return %c0_i32, %c0_i32_0 : i32, i32
  }
  func.func @transform_16(%arg0: i32) -> (i32, i32) {
    %c0_i32 = arith.constant 0 : i32
    %c0_i32_0 = arith.constant 0 : i32
    %c0_i32_1 = arith.constant 0 : i32
    return %c0_i32, %c0_i32_0 : i32, i32
  }
  func.func @transform_17(%arg0: i32) -> (i32, i32) {
    %c0_i32 = arith.constant 0 : i32
    %c0_i32_0 = arith.constant 0 : i32
    %c0_i32_1 = arith.constant 0 : i32
    return %c0_i32, %c0_i32_0 : i32, i32
  }
  func.func @transform_18(%arg0: i32) -> (i32, i32) {
    %c0_i32 = arith.constant 0 : i32
    %c0_i32_0 = arith.constant 0 : i32
    return %arg0, %c0_i32 : i32, i32
  }
}

</mosaic_0001>

<llo_original>
// kernel: proprioception_forward.1
$region0: #{proprioception_forward.1}
  #allocation0 [shape = 'u32[]', space=smem, size = 0x4, offset = 0x4, fixed_abs, tag = 'smem constant byte address 0x4 - core index']
  #allocation1 [shape = 'u32[144,128]{1,0:T(1,128)}', space=vmem, size = 0x12000, scoped, tag = 'internal scratch']
  %s0 = inlined_call_operand.vmem [shape: f32[2,1206], index: 0, kind: input, shape index: {}]
  %s1 = inlined_call_operand.hbm [shape: f32[2,900], index: 1, kind: input, shape index: {}]
  %s2 = inlined_call_operand.hbm [shape: f32[2,500], index: 2, kind: input, shape index: {}]
  %s3 = inlined_call_operand.vmem [shape: bf16[1206,128], index: 3, kind: input, shape index: {}]
  %s4 = inlined_call_operand.vmem [shape: bf16[128,32], index: 4, kind: input, shape index: {}]
  %s5 = inlined_call_operand.vmem [shape: f32[1,32], index: 5, kind: input, shape index: {}]
  %s6 = inlined_call_operand.vmem [shape: bf16[900,128], index: 6, kind: input, shape index: {}]
  %s7 = inlined_call_operand.vmem [shape: bf16[128,32], index: 7, kind: input, shape index: {}]
  %s8 = inlined_call_operand.vmem [shape: f32[1,32], index: 8, kind: input, shape index: {}]
  %s9 = inlined_call_operand.hbm [shape: bf16[500,128], index: 9, kind: input, shape index: {}]
  %s10 = inlined_call_operand.vmem [shape: bf16[128,32], index: 10, kind: input, shape index: {}]
  %s11 = inlined_call_operand.vmem [shape: f32[1,32], index: 11, kind: input, shape index: {}]
  %s12 = inlined_call_operand.hbm [shape: bf16[32,64], index: 12, kind: input, shape index: {}]
  %s13 = inlined_call_operand.hbm [shape: bf16[32,64], index: 13, kind: input, shape index: {}]
  %s14 = inlined_call_operand.hbm [shape: bf16[32,64], index: 14, kind: input, shape index: {}]
  %s15 = inlined_call_operand.hbm [shape: f32[1,64], index: 15, kind: input, shape index: {}]
  %s16 = inlined_call_operand.vmem [shape: bf16[64,64], index: 16, kind: input, shape index: {}]
  %s17 = inlined_call_operand.hbm [shape: f32[1,64], index: 17, kind: input, shape index: {}]
  %s18 = inlined_call_operand.hbm [shape: f32[2,64], index: 18, kind: output, shape index: {}]
  %s19 = sld [smem:[#allocation0]]
  $region114: #{proprioception_forward.1} parent=0
    _
  %s21 = ssub.s32 1, %s19
  %s22 = scalar_select 0, %s21, %s19
  $region1: #{proprioception_forward.1} parent=0
    #allocation2 [shape = 'u8[8192]{0}', space=vmem, size = 0x2000, scoped, tag = 'input window, operand 1, single buffered']
    #allocation3 [shape = 's32[1]{0}', space=sflag, size = 0x4, scoped, tag = 'scoped memory for proprioception_forward.1']
    #allocation4 [shape = 's32[1]{0}', space=sflag, size = 0x4, scoped, tag = 'scoped memory for proprioception_forward.1']
    #allocation5 [shape = 'u8[4096]{0}', space=vmem, size = 0x1000, scoped, tag = 'input window, operand 2, single buffered']
    #allocation6 [shape = 's32[1]{0}', space=sflag, size = 0x4, scoped, tag = 'scoped memory for proprioception_forward.1']
    #allocation7 [shape = 'u8[129024]{0}', space=vmem, size = 0x1f800, scoped, tag = 'input window, operand 9, single buffered']
    #allocation8 [shape = 'u8[8192]{0}', space=vmem, size = 0x2000, scoped, tag = 'input window, operand 12, single buffered']
    #allocation9 [shape = 's32[1]{0}', space=sflag, size = 0x4, scoped, tag = 'scoped memory for proprioception_forward.1']
    #allocation10 [shape = 'u8[8192]{0}', space=vmem, size = 0x2000, scoped, tag = 'input window, operand 13, single buffered']
    #allocation11 [shape = 'u8[8192]{0}', space=vmem, size = 0x2000, scoped, tag = 'input window, operand 14, single buffered']
    #allocation12 [shape = 's32[1]{0}', space=sflag, size = 0x4, scoped, tag = 'scoped memory for proprioception_forward.1']
    #allocation13 [shape = 'u8[512]{0}', space=vmem, size = 0x400, scoped, tag = 'input window, operand 15, single buffered']
    #allocation14 [shape = 'u8[512]{0}', space=vmem, size = 0x400, scoped, tag = 'input window, operand 17, single buffered']
    #allocation15 [shape = 's32[1]{0}', space=sflag, size = 0x4, scoped, tag = 'scoped memory for proprioception_forward.1']
    #allocation16 [shape = 'u8[1024]{0}', space=vmem, size = 0x400, scoped, tag = 'output window, operand 0, single buffered']
    %23 = vsyncpa [#allocation3], 0
    %24 = vsyncpa [#allocation6], 0
    %25 = vsyncpa [#allocation9], 0
    %26 = vsyncpa [#allocation12], 0
    %27 = vsyncpa [#allocation15], 0
    %28 = vsyncpa [#allocation4], 0
    // Predicated region
    $region2: #{proprioception_forward.1} parent=1 // pred_check
      _
    $region3: #{proprioception_forward.1} parent=1 // pred_check_branch
      %30 = sbr.rel (0) target = $region5
    $region4: #{proprioception_forward.1} parent=1 // pred_region
      _
    $region5: #{proprioception_forward.1} parent=1 // pred_fallthru
      _
    // Predicated region
    $region6: #{proprioception_forward.1} parent=1 // pred_check
      _
    $region7: #{proprioception_forward.1} parent=1 // pred_check_branch
      %32 = sbr.rel (0) target = $region9
    $region8: #{proprioception_forward.1} parent=1 // pred_region
      %s34 = ssub.s32 256, 256
      %35 = vsyncadd [#allocation3], %s34
      %s37 = sshll.u32 [#allocation2], 4
      %s38 = int_to_ptr.vmem [resolvable:$true] %s37
      %40 = dma.hbm_to_vmem [thread:$0]  %s1, 256, %s38, [#allocation3]
    $region9: #{proprioception_forward.1} parent=1 // pred_fallthru
      _
    // Predicated region
    $region10: #{proprioception_forward.1} parent=1 // pred_check
      _
    $region11: #{proprioception_forward.1} parent=1 // pred_check_branch
      %42 = sbr.rel (0) target = $region13
    $region12: #{proprioception_forward.1} parent=1 // pred_region
      %s44 = ssub.s32 128, 128
      %45 = vsyncadd [#allocation6], %s44
      %s47 = sshll.u32 [#allocation5], 4
      %s48 = int_to_ptr.vmem [resolvable:$true] %s47
      %50 = dma.hbm_to_vmem [thread:$0]  %s2, 128, %s48, [#allocation6]
    $region13: #{proprioception_forward.1} parent=1 // pred_fallthru
      _
    // Predicated region
    $region14: #{proprioception_forward.1} parent=1 // pred_check
      _
    $region15: #{proprioception_forward.1} parent=1 // pred_check_branch
      %52 = sbr.rel (0) target = $region17
    $region16: #{proprioception_forward.1} parent=1 // pred_region
      _
    $region17: #{proprioception_forward.1} parent=1 // pred_fallthru
      _
    // Predicated region
    $region18: #{proprioception_forward.1} parent=1 // pred_check
      _
    $region19: #{proprioception_forward.1} parent=1 // pred_check_branch
      %54 = sbr.rel (0) target = $region21
    $region20: #{proprioception_forward.1} parent=1 // pred_region
      _
    $region21: #{proprioception_forward.1} parent=1 // pred_fallthru
      _
    // Predicated region
    $region22: #{proprioception_forward.1} parent=1 // pred_check
      _
    $region23: #{proprioception_forward.1} parent=1 // pred_check_branch
      %56 = sbr.rel (0) target = $region25
    $region24: #{proprioception_forward.1} parent=1 // pred_region
      _
    $region25: #{proprioception_forward.1} parent=1 // pred_fallthru
      _
    // Predicated region
    $region26: #{proprioception_forward.1} parent=1 // pred_check
      _
    $region27: #{proprioception_forward.1} parent=1 // pred_check_branch
      %58 = sbr.rel (0) target = $region29
    $region28: #{proprioception_forward.1} parent=1 // pred_region
      _
    $region29: #{proprioception_forward.1} parent=1 // pred_fallthru
      _
    // Predicated region
    $region30: #{proprioception_forward.1} parent=1 // pred_check
      _
    $region31: #{proprioception_forward.1} parent=1 // pred_check_branch
      %60 = sbr.rel (0) target = $region33
    $region32: #{proprioception_forward.1} parent=1 // pred_region
      _
    $region33: #{proprioception_forward.1} parent=1 // pred_fallthru
      _
    // Predicated region
    $region34: #{proprioception_forward.1} parent=1 // pred_check
      _
    $region35: #{proprioception_forward.1} parent=1 // pred_check_branch
      %62 = sbr.rel (0) target = $region37
    $region36: #{proprioception_forward.1} parent=1 // pred_region
      _
    $region37: #{proprioception_forward.1} parent=1 // pred_fallthru
      _
    // Predicated region
    $region38: #{proprioception_forward.1} parent=1 // pred_check
      _
    $region39: #{proprioception_forward.1} parent=1 // pred_check_branch
      %64 = sbr.rel (0) target = $region41
    $region40: #{proprioception_forward.1} parent=1 // pred_region
      %s66 = ssub.s32 4032, 4032
      %67 = vsyncadd [#allocation6], %s66
      %s68 = sshll.u32 [#allocation7], 4
      %s69 = int_to_ptr.vmem [resolvable:$true] %s68
      %74 = dma.hbm_to_vmem [thread:$0]  %s9, 4032, %s69, [#allocation6], 64, 64, 4
    $region41: #{proprioception_forward.1} parent=1 // pred_fallthru
      _
    // Predicated region
    $region42: #{proprioception_forward.1} parent=1 // pred_check
      _
    $region43: #{proprioception_forward.1} parent=1 // pred_check_branch
      %76 = sbr.rel (0) target = $region45
    $region44: #{proprioception_forward.1} parent=1 // pred_region
      _
    $region45: #{proprioception_forward.1} parent=1 // pred_fallthru
      _
    // Predicated region
    $region46: #{proprioception_forward.1} parent=1 // pred_check
      _
    $region47: #{proprioception_forward.1} parent=1 // pred_check_branch
      %78 = sbr.rel (0) target = $region49
    $region48: #{proprioception_forward.1} parent=1 // pred_region
      _
    $region49: #{proprioception_forward.1} parent=1 // pred_fallthru
      _
    // Predicated region
    $region50: #{proprioception_forward.1} parent=1 // pred_check
      _
    $region51: #{proprioception_forward.1} parent=1 // pred_check_branch
      %80 = sbr.rel (0) target = $region53
    $region52: #{proprioception_forward.1} parent=1 // pred_region
      %s82 = ssub.s32 256, 256
      %83 = vsyncadd [#allocation9], %s82
      %s84 = sshll.u32 [#allocation8], 4
      %s85 = int_to_ptr.vmem [resolvable:$true] %s84
      %90 = dma.hbm_to_vmem [thread:$0]  %s12, 256, %s85, [#allocation9], 64, 64, 4
    $region53: #{proprioception_forward.1} parent=1 // pred_fallthru
      _
    // Predicated region
    $region54: #{proprioception_forward.1} parent=1 // pred_check
      _
    $region55: #{proprioception_forward.1} parent=1 // pred_check_branch
      %92 = sbr.rel (0) target = $region57
    $region56: #{proprioception_forward.1} parent=1 // pred_region
      %s94 = ssub.s32 256, 256
      %95 = vsyncadd [#allocation9], %s94
      %s96 = sshll.u32 [#allocation10], 4
      %s97 = int_to_ptr.vmem [resolvable:$true] %s96
      %102 = dma.hbm_to_vmem [thread:$0]  %s13, 256, %s97, [#allocation9], 64, 64, 4
    $region57: #{proprioception_forward.1} parent=1 // pred_fallthru
      _
    // Predicated region
    $region58: #{proprioception_forward.1} parent=1 // pred_check
      _
    $region59: #{proprioception_forward.1} parent=1 // pred_check_branch
      %104 = sbr.rel (0) target = $region61
    $region60: #{proprioception_forward.1} parent=1 // pred_region
      %s106 = ssub.s32 256, 256
      %107 = vsyncadd [#allocation12], %s106
      %s108 = sshll.u32 [#allocation11], 4
      %s109 = int_to_ptr.vmem [resolvable:$true] %s108
      %114 = dma.hbm_to_vmem [thread:$0]  %s14, 256, %s109, [#allocation12], 64, 64, 4
    $region61: #{proprioception_forward.1} parent=1 // pred_fallthru
      _
    // Predicated region
    $region62: #{proprioception_forward.1} parent=1 // pred_check
      _
    $region63: #{proprioception_forward.1} parent=1 // pred_check_branch
      %116 = sbr.rel (0) target = $region65
    $region64: #{proprioception_forward.1} parent=1 // pred_region
      %s118 = ssub.s32 16, 16
      %119 = vsyncadd [#allocation12], %s118
      %s121 = sshll.u32 [#allocation13], 4
      %s122 = int_to_ptr.vmem [resolvable:$true] %s121
      %124 = dma.hbm_to_vmem [thread:$0]  %s15, 16, %s122, [#allocation12]
    $region65: #{proprioception_forward.1} parent=1 // pred_fallthru
      _
    // Predicated region
    $region66: #{proprioception_forward.1} parent=1 // pred_check
      _
    $region67: #{proprioception_forward.1} parent=1 // pred_check_branch
      %126 = sbr.rel (0) target = $region69
    $region68: #{proprioception_forward.1} parent=1 // pred_region
      _
    $region69: #{proprioception_forward.1} parent=1 // pred_fallthru
      _
    // Predicated region
    $region70: #{proprioception_forward.1} parent=1 // pred_check
      _
    $region71: #{proprioception_forward.1} parent=1 // pred_check_branch
      %128 = sbr.rel (0) target = $region73
    $region72: #{proprioception_forward.1} parent=1 // pred_region
      %s130 = ssub.s32 16, 16
      %131 = vsyncadd [#allocation15], %s130
      %s133 = sshll.u32 [#allocation14], 4
      %s134 = int_to_ptr.vmem [resolvable:$true] %s133
      %136 = dma.hbm_to_vmem [thread:$0]  %s17, 16, %s134, [#allocation15]
    $region73: #{proprioception_forward.1} parent=1 // pred_fallthru
      _
    // Predicated region
    $region74: #{proprioception_forward.1} parent=1 // pred_check
      _
    $region75: #{proprioception_forward.1} parent=1 // pred_check_branch
      %138 = sbr.rel (0) target = $region77
    $region76: #{proprioception_forward.1} parent=1 // pred_region
      %139 = dma.done [#allocation3], 256
    $region77: #{proprioception_forward.1} parent=1 // pred_fallthru
      _
    // Predicated region
    $region78: #{proprioception_forward.1} parent=1 // pred_check
      _
    $region79: #{proprioception_forward.1} parent=1 // pred_check_branch
      %141 = sbr.rel (0) target = $region81
    $region80: #{proprioception_forward.1} parent=1 // pred_region
      %142 = dma.done [#allocation6], 128
    $region81: #{proprioception_forward.1} parent=1 // pred_fallthru
      _
    // Predicated region
    $region82: #{proprioception_forward.1} parent=1 // pred_check
      _
    $region83: #{proprioception_forward.1} parent=1 // pred_check_branch
      %144 = sbr.rel (0) target = $region85
    $region84: #{proprioception_forward.1} parent=1 // pred_region
      %145 = dma.done [#allocation6], 4032
    $region85: #{proprioception_forward.1} parent=1 // pred_fallthru
      _
    // Predicated region
    $region86: #{proprioception_forward.1} parent=1 // pred_check
      _
    $region87: #{proprioception_forward.1} parent=1 // pred_check_branch
      %147 = sbr.rel (0) target = $region89
    $region88: #{proprioception_forward.1} parent=1 // pred_region
      %148 = dma.done [#allocation9], 256
    $region89: #{proprioception_forward.1} parent=1 // pred_fallthru
      _
    // Predicated region
    $region90: #{proprioception_forward.1} parent=1 // pred_check
      _
    $region91: #{proprioception_forward.1} parent=1 // pred_check_branch
      %150 = sbr.rel (0) target = $region93
    $region92: #{proprioception_forward.1} parent=1 // pred_region
      %151 = dma.done [#allocation9], 256
    $region93: #{proprioception_forward.1} parent=1 // pred_fallthru
      _
    // Predicated region
    $region94: #{proprioception_forward.1} parent=1 // pred_check
      _
    $region95: #{proprioception_forward.1} parent=1 // pred_check_branch
      %153 = sbr.rel (0) target = $region97
    $region96: #{proprioception_forward.1} parent=1 // pred_region
      %154 = dma.done [#allocation12], 256
    $region97: #{proprioception_forward.1} parent=1 // pred_fallthru
      _
    // Predicated region
    $region98: #{proprioception_forward.1} parent=1 // pred_check
      _
    $region99: #{proprioception_forward.1} parent=1 // pred_check_branch
      %156 = sbr.rel (0) target = $region101
    $region100: #{proprioception_forward.1} parent=1 // pred_region
      %157 = dma.done [#allocation12], 16
    $region101: #{proprioception_forward.1} parent=1 // pred_fallthru
      _
    // Predicated region
    $region102: #{proprioception_forward.1} parent=1 // pred_check
      _
    $region103: #{proprioception_forward.1} parent=1 // pred_check_branch
      %159 = sbr.rel (0) target = $region105
    $region104: #{proprioception_forward.1} parent=1 // pred_region
      %160 = dma.done [#allocation15], 16
    $region105: #{proprioception_forward.1} parent=1 // pred_fallthru
      _
    %v162 = vld [vmem:[%s0] sm:$0xff]
    %v163 = vld [vmem:[%s0 + $0x8] sm:$0xff]
    %v164 = vld [vmem:[%s0 + $0x10] sm:$0xf]
    %v168 = vcombine.high %v162, %v162
    %v170 = vunpack.c.l.s4 1983009808
    %v171 = vunpack.c.0.s8 %v170
    %v172 = vlaneseq
    %v173 = vshrl.u32 %v172, 7
    %v174 = vsub.s32 %v171, %v173
    %v175 = vrot.slane %v162, %v174
    %v177 = vunpack.c.l.s4 1983009808
    %v178 = vunpack.c.0.s8 %v177
    %v179 = vlaneseq
    %v180 = vshrl.u32 %v179, 7
    %v181 = vsub.s32 %v178, %v180
    %v182 = vrot.slane %v168, %v181
    %v183 = vcombine.high %v175, %v175
    %v184 = vcombine.high %v182, %v182
    %v185 = vcombine.high %v163, %v163
    %v187 = vunpack.c.l.s4 1983009808
    %v188 = vunpack.c.0.s8 %v187
    %v189 = vlaneseq
    %v190 = vshrl.u32 %v189, 7
    %v191 = vsub.s32 %v188, %v190
    %v192 = vrot.slane %v163, %v191
    %v194 = vunpack.c.l.s4 1983009808
    %v195 = vunpack.c.0.s8 %v194
    %v196 = vlaneseq
    %v197 = vshrl.u32 %v196, 7
    %v198 = vsub.s32 %v195, %v197
    %v199 = vrot.slane %v185, %v198
    %v200 = vcombine.high %v192, %v192
    %v201 = vcombine.high %v199, %v199
    %v203 = vunpack.c.l.s4 1983009808
    %v204 = vunpack.c.0.s8 %v203
    %v205 = vlaneseq
    %v206 = vshrl.u32 %v205, 7
    %v207 = vsub.s32 %v204, %v206
    %v208 = vrot.slane %v164, %v207
    %v209 = vcombine.high %v208, %v208
    %v220 = vpack.c.bf16 %v175, %v175
    %v221 = vpack.c.bf16 %v183, %v183
    %v222 = vpack.c.bf16 %v182, %v182
    %v223 = vpack.c.bf16 %v184, %v184
    %v224 = vpack.c.bf16 %v192, %v192
    %v225 = vpack.c.bf16 %v200, %v200
    %v226 = vpack.c.bf16 %v199, %v199
    %v227 = vpack.c.bf16 %v201, %v201
    %v228 = vpack.c.bf16 %v208, %v208
    %v229 = vpack.c.bf16 %v209, %v209
    %v230 = vld [vmem:[%s3] sm:$0xf]
    %v231 = vld [vmem:[%s3 + $0x4] sm:$0xf]
    %v232 = vld [vmem:[%s3 + $0x8] sm:$0xf]
    %v233 = vld [vmem:[%s3 + $0xc] sm:$0xf]
    %v234 = vld [vmem:[%s3 + $0x10] sm:$0xf]
    %v235 = vld [vmem:[%s3 + $0x14] sm:$0xf]
    %v236 = vld [vmem:[%s3 + $0x18] sm:$0xf]
    %v237 = vld [vmem:[%s3 + $0x1c] sm:$0xf]
    %v238 = vld [vmem:[%s3 + $0x20] sm:$0xf]
    %v239 = vld [vmem:[%s3 + $0x24] sm:$0xf]
    %v240 = vld [vmem:[%s3 + $0x28] sm:$0xf]
    %v241 = vld [vmem:[%s3 + $0x2c] sm:$0xf]
    %v242 = vld [vmem:[%s3 + $0x30] sm:$0xf]
    %v243 = vld [vmem:[%s3 + $0x34] sm:$0xf]
    %v244 = vld [vmem:[%s3 + $0x38] sm:$0xf]
    %v245 = vld [vmem:[%s3 + $0x3c] sm:$0xf]
    %v246 = vld [vmem:[%s3 + $0x40] sm:$0xf]
    %v247 = vld [vmem:[%s3 + $0x44] sm:$0xf]
    %v248 = vld [vmem:[%s3 + $0x48] sm:$0xf]
    %v249 = vld [vmem:[%s3 + $0x4c] sm:$0xf]
    %v250 = vld [vmem:[%s3 + $0x50] sm:$0xf]
    %v251 = vld [vmem:[%s3 + $0x54] sm:$0xf]
    %v252 = vld [vmem:[%s3 + $0x58] sm:$0xf]
    %v253 = vld [vmem:[%s3 + $0x5c] sm:$0xf]
    %v254 = vld [vmem:[%s3 + $0x60] sm:$0xf]
    %v255 = vld [vmem:[%s3 + $0x64] sm:$0xf]
    %v256 = vld [vmem:[%s3 + $0x68] sm:$0xf]
    %v257 = vld [vmem:[%s3 + $0x6c] sm:$0xf]
    %v258 = vld [vmem:[%s3 + $0x70] sm:$0xf]
    %v259 = vld [vmem:[%s3 + $0x74] sm:$0xf]
    %v260 = vld [vmem:[%s3 + $0x78] sm:$0xf]
    %v261 = vld [vmem:[%s3 + $0x7c] sm:$0xf]
    %v262 = vld [vmem:[%s3 + $0x80] sm:$0xf]
    %v263 = vld [vmem:[%s3 + $0x84] sm:$0xf]
    %v264 = vld [vmem:[%s3 + $0x88] sm:$0xf]
    %v265 = vld [vmem:[%s3 + $0x8c] sm:$0xf]
    %v266 = vld [vmem:[%s3 + $0x90] sm:$0xf]
    %v267 = vld [vmem:[%s3 + $0x94] sm:$0xf]
    %v268 = vld [vmem:[%s3 + $0x98] sm:$0xf]
    %v269 = vld [vmem:[%s3 + $0x9c] sm:$0xf]
    %v270 = vld [vmem:[%s3 + $0xa0] sm:$0xf]
    %v271 = vld [vmem:[%s3 + $0xa4] sm:$0xf]
    %v272 = vld [vmem:[%s3 + $0xa8] sm:$0xf]
    %v273 = vld [vmem:[%s3 + $0xac] sm:$0xf]
    %v274 = vld [vmem:[%s3 + $0xb0] sm:$0xf]
    %v275 = vld [vmem:[%s3 + $0xb4] sm:$0xf]
    %v276 = vld [vmem:[%s3 + $0xb8] sm:$0xf]
    %v277 = vld [vmem:[%s3 + $0xbc] sm:$0xf]
    %v278 = vld [vmem:[%s3 + $0xc0] sm:$0xf]
    %v279 = vld [vmem:[%s3 + $0xc4] sm:$0xf]
    %v280 = vld [vmem:[%s3 + $0xc8] sm:$0xf]
    %v281 = vld [vmem:[%s3 + $0xcc] sm:$0xf]
    %v282 = vld [vmem:[%s3 + $0xd0] sm:$0xf]
    %v283 = vld [vmem:[%s3 + $0xd4] sm:$0xf]
    %v284 = vld [vmem:[%s3 + $0xd8] sm:$0xf]
    %v285 = vld [vmem:[%s3 + $0xdc] sm:$0xf]
    %v286 = vld [vmem:[%s3 + $0xe0] sm:$0xf]
    %v287 = vld [vmem:[%s3 + $0xe4] sm:$0xf]
    %v288 = vld [vmem:[%s3 + $0xe8] sm:$0xf]
    %v289 = vld [vmem:[%s3 + $0xec] sm:$0xf]
    %v290 = vld [vmem:[%s3 + $0xf0] sm:$0xf]
    %v291 = vld [vmem:[%s3 + $0xf4] sm:$0xf]
    %v292 = vld [vmem:[%s3 + $0xf8] sm:$0xf]
    %v293 = vld [vmem:[%s3 + $0xfc] sm:$0xf]
    %v294 = vld [vmem:[%s3 + $0x100] sm:$0xf]
    %v295 = vld [vmem:[%s3 + $0x104] sm:$0xf]
    %v296 = vld [vmem:[%s3 + $0x108] sm:$0xf]
    %v297 = vld [vmem:[%s3 + $0x10c] sm:$0xf]
    %v298 = vld [vmem:[%s3 + $0x110] sm:$0xf]
    %v299 = vld [vmem:[%s3 + $0x114] sm:$0xf]
    %v300 = vld [vmem:[%s3 + $0x118] sm:$0xf]
    %v301 = vld [vmem:[%s3 + $0x11c] sm:$0xf]
    %v302 = vld [vmem:[%s3 + $0x120] sm:$0xf]
    %v303 = vld [vmem:[%s3 + $0x124] sm:$0xf]
    %v304 = vld [vmem:[%s3 + $0x128] sm:$0xf]
    %v305 = vld [vmem:[%s3 + $0x12c] sm:$0xf]
    %v306 = vld [vmem:[%s3 + $0x130] sm:$0xf]
    %v307 = vld [vmem:[%s3 + $0x134] sm:$0xf]
    %v308 = vld [vmem:[%s3 + $0x138] sm:$0xf]
    %v309 = vld [vmem:[%s3 + $0x13c] sm:$0xf]
    %v310 = vld [vmem:[%s3 + $0x140] sm:$0xf]
    %v311 = vld [vmem:[%s3 + $0x144] sm:$0xf]
    %v312 = vld [vmem:[%s3 + $0x148] sm:$0xf]
    %v313 = vld [vmem:[%s3 + $0x14c] sm:$0xf]
    %v314 = vld [vmem:[%s3 + $0x150] sm:$0xf]
    %v315 = vld [vmem:[%s3 + $0x154] sm:$0xf]
    %v316 = vld [vmem:[%s3 + $0x158] sm:$0xf]
    %v317 = vld [vmem:[%s3 + $0x15c] sm:$0xf]
    %v318 = vld [vmem:[%s3 + $0x160] sm:$0xf]
    %v319 = vld [vmem:[%s3 + $0x164] sm:$0xf]
    %v320 = vld [vmem:[%s3 + $0x168] sm:$0xf]
    %v321 = vld [vmem:[%s3 + $0x16c] sm:$0xf]
    %v322 = vld [vmem:[%s3 + $0x170] sm:$0xf]
    %v323 = vld [vmem:[%s3 + $0x174] sm:$0xf]
    %v324 = vld [vmem:[%s3 + $0x178] sm:$0xf]
    %v325 = vld [vmem:[%s3 + $0x17c] sm:$0xf]
    %v326 = vld [vmem:[%s3 + $0x180] sm:$0xf]
    %v327 = vld [vmem:[%s3 + $0x184] sm:$0xf]
    %v328 = vld [vmem:[%s3 + $0x188] sm:$0xf]
    %v329 = vld [vmem:[%s3 + $0x18c] sm:$0xf]
    %v330 = vld [vmem:[%s3 + $0x190] sm:$0xf]
    %v331 = vld [vmem:[%s3 + $0x194] sm:$0xf]
    %v332 = vld [vmem:[%s3 + $0x198] sm:$0xf]
    %v333 = vld [vmem:[%s3 + $0x19c] sm:$0xf]
    %v334 = vld [vmem:[%s3 + $0x1a0] sm:$0xf]
    %v335 = vld [vmem:[%s3 + $0x1a4] sm:$0xf]
    %v336 = vld [vmem:[%s3 + $0x1a8] sm:$0xf]
    %v337 = vld [vmem:[%s3 + $0x1ac] sm:$0xf]
    %v338 = vld [vmem:[%s3 + $0x1b0] sm:$0xf]
    %v339 = vld [vmem:[%s3 + $0x1b4] sm:$0xf]
    %v340 = vld [vmem:[%s3 + $0x1b8] sm:$0xf]
    %v341 = vld [vmem:[%s3 + $0x1bc] sm:$0xf]
    %v342 = vld [vmem:[%s3 + $0x1c0] sm:$0xf]
    %v343 = vld [vmem:[%s3 + $0x1c4] sm:$0xf]
    %v344 = vld [vmem:[%s3 + $0x1c8] sm:$0xf]
    %v345 = vld [vmem:[%s3 + $0x1cc] sm:$0xf]
    %v346 = vld [vmem:[%s3 + $0x1d0] sm:$0xf]
    %v347 = vld [vmem:[%s3 + $0x1d4] sm:$0xf]
    %v348 = vld [vmem:[%s3 + $0x1d8] sm:$0xf]
    %v349 = vld [vmem:[%s3 + $0x1dc] sm:$0xf]
    %v350 = vld [vmem:[%s3 + $0x1e0] sm:$0xf]
    %v351 = vld [vmem:[%s3 + $0x1e4] sm:$0xf]
    %v352 = vld [vmem:[%s3 + $0x1e8] sm:$0xf]
    %v353 = vld [vmem:[%s3 + $0x1ec] sm:$0xf]
    %v354 = vld [vmem:[%s3 + $0x1f0] sm:$0xf]
    %v355 = vld [vmem:[%s3 + $0x1f4] sm:$0xf]
    %v356 = vld [vmem:[%s3 + $0x1f8] sm:$0xf]
    %v357 = vld [vmem:[%s3 + $0x1fc] sm:$0xf]
    %v358 = vld [vmem:[%s3 + $0x200] sm:$0xf]
    %v359 = vld [vmem:[%s3 + $0x204] sm:$0xf]
    %v360 = vld [vmem:[%s3 + $0x208] sm:$0xf]
    %v361 = vld [vmem:[%s3 + $0x20c] sm:$0xf]
    %v362 = vld [vmem:[%s3 + $0x210] sm:$0xf]
    %v363 = vld [vmem:[%s3 + $0x214] sm:$0xf]
    %v364 = vld [vmem:[%s3 + $0x218] sm:$0xf]
    %v365 = vld [vmem:[%s3 + $0x21c] sm:$0xf]
    %v366 = vld [vmem:[%s3 + $0x220] sm:$0xf]
    %v367 = vld [vmem:[%s3 + $0x224] sm:$0xf]
    %v368 = vld [vmem:[%s3 + $0x228] sm:$0xf]
    %v369 = vld [vmem:[%s3 + $0x22c] sm:$0xf]
    %v370 = vld [vmem:[%s3 + $0x230] sm:$0xf]
    %v371 = vld [vmem:[%s3 + $0x234] sm:$0xf]
    %v372 = vld [vmem:[%s3 + $0x238] sm:$0xf]
    %v373 = vld [vmem:[%s3 + $0x23c] sm:$0xf]
    %v374 = vld [vmem:[%s3 + $0x240] sm:$0xf]
    %v375 = vld [vmem:[%s3 + $0x244] sm:$0xf]
    %v376 = vld [vmem:[%s3 + $0x248] sm:$0xf]
    %v377 = vld [vmem:[%s3 + $0x24c] sm:$0xf]
    %v378 = vld [vmem:[%s3 + $0x250] sm:$0xf]
    %v379 = vld [vmem:[%s3 + $0x254] sm:$0xf]
    %v380 = vld [vmem:[%s3 + $0x258] sm:$0x7]
    %v532 = vunpack.c.l.b16 %v230
    %v533 = vunpack.c.l.b16 %v231
    %v534 = vunpack.c.l.b16 %v232
    %v535 = vunpack.c.l.b16 %v233
    %v536 = vunpack.c.l.b16 %v234
    %v537 = vunpack.c.l.b16 %v235
    %v538 = vunpack.c.l.b16 %v236
    %v539 = vunpack.c.l.b16 %v237
    %v540 = vunpack.c.l.b16 %v238
    %v541 = vunpack.c.l.b16 %v239
    %v542 = vunpack.c.l.b16 %v240
    %v543 = vunpack.c.l.b16 %v241
    %v544 = vunpack.c.l.b16 %v242
    %v545 = vunpack.c.l.b16 %v243
    %v546 = vunpack.c.l.b16 %v244
    %v547 = vunpack.c.l.b16 %v245
    %v548 = vunpack.c.l.b16 %v246
    %v549 = vunpack.c.l.b16 %v247
    %v550 = vunpack.c.l.b16 %v248
    %v551 = vunpack.c.l.b16 %v249
    %v552 = vunpack.c.l.b16 %v250
    %v553 = vunpack.c.l.b16 %v251
    %v554 = vunpack.c.l.b16 %v252
    %v555 = vunpack.c.l.b16 %v253
    %v556 = vunpack.c.l.b16 %v254
    %v557 = vunpack.c.l.b16 %v255
    %v558 = vunpack.c.l.b16 %v256
    %v559 = vunpack.c.l.b16 %v257
    %v560 = vunpack.c.l.b16 %v258
    %v561 = vunpack.c.l.b16 %v259
    %v562 = vunpack.c.l.b16 %v260
    %v563 = vunpack.c.l.b16 %v261
    %v564 = vunpack.c.l.b16 %v262
    %v565 = vunpack.c.l.b16 %v263
    %v566 = vunpack.c.l.b16 %v264
    %v567 = vunpack.c.l.b16 %v265
    %v568 = vunpack.c.l.b16 %v266
    %v569 = vunpack.c.l.b16 %v267
    %v570 = vunpack.c.l.b16 %v268
    %v571 = vunpack.c.l.b16 %v269
    %v572 = vunpack.c.l.b16 %v270
    %v573 = vunpack.c.l.b16 %v271
    %v574 = vunpack.c.l.b16 %v272
    %v575 = vunpack.c.l.b16 %v273
    %v576 = vunpack.c.l.b16 %v274
    %v577 = vunpack.c.l.b16 %v275
    %v578 = vunpack.c.l.b16 %v276
    %v579 = vunpack.c.l.b16 %v277
    %v580 = vunpack.c.l.b16 %v278
    %v581 = vunpack.c.l.b16 %v279
    %v582 = vunpack.c.l.b16 %v280
    %v583 = vunpack.c.l.b16 %v281
    %v584 = vunpack.c.l.b16 %v282
    %v585 = vunpack.c.l.b16 %v283
    %v586 = vunpack.c.l.b16 %v284
    %v587 = vunpack.c.l.b16 %v285
    %v588 = vunpack.c.l.b16 %v286
    %v589 = vunpack.c.l.b16 %v287
    %v590 = vunpack.c.l.b16 %v288
    %v591 = vunpack.c.l.b16 %v289
    %v592 = vunpack.c.l.b16 %v290
    %v593 = vunpack.c.l.b16 %v291
    %v594 = vunpack.c.l.b16 %v292
    %v595 = vunpack.c.l.b16 %v293
    %v596 = vunpack.c.l.b16 %v294
    %v597 = vunpack.c.l.b16 %v295
    %v598 = vunpack.c.l.b16 %v296
    %v599 = vunpack.c.l.b16 %v297
    %v600 = vunpack.c.l.b16 %v298
    %v601 = vunpack.c.l.b16 %v299
    %v602 = vunpack.c.l.b16 %v300
    %v603 = vunpack.c.l.b16 %v301
    %v604 = vunpack.c.l.b16 %v302
    %v605 = vunpack.c.l.b16 %v303
    %v606 = vunpack.c.l.b16 %v304
    %v607 = vunpack.c.l.b16 %v305
    %v608 = vunpack.c.l.b16 %v306
    %v609 = vunpack.c.l.b16 %v307
    %v610 = vunpack.c.l.b16 %v308
    %v611 = vunpack.c.l.b16 %v309
    %v612 = vunpack.c.l.b16 %v310
    %v613 = vunpack.c.l.b16 %v311
    %v614 = vunpack.c.l.b16 %v312
    %v615 = vunpack.c.l.b16 %v313
    %v616 = vunpack.c.l.b16 %v314
    %v617 = vunpack.c.l.b16 %v315
    %v618 = vunpack.c.l.b16 %v316
    %v619 = vunpack.c.l.b16 %v317
    %v620 = vunpack.c.l.b16 %v318
    %v621 = vunpack.c.l.b16 %v319
    %v622 = vunpack.c.l.b16 %v320
    %v623 = vunpack.c.l.b16 %v321
    %v624 = vunpack.c.l.b16 %v322
    %v625 = vunpack.c.l.b16 %v323
    %v626 = vunpack.c.l.b16 %v324
    %v627 = vunpack.c.l.b16 %v325
    %v628 = vunpack.c.l.b16 %v326
    %v629 = vunpack.c.l.b16 %v327
    %v630 = vunpack.c.l.b16 %v328
    %v631 = vunpack.c.l.b16 %v329
    %v632 = vunpack.c.l.b16 %v330
    %v633 = vunpack.c.l.b16 %v331
    %v634 = vunpack.c.l.b16 %v332
    %v635 = vunpack.c.l.b16 %v333
    %v636 = vunpack.c.l.b16 %v334
    %v637 = vunpack.c.l.b16 %v335
    %v638 = vunpack.c.l.b16 %v336
    %v639 = vunpack.c.l.b16 %v337
    %v640 = vunpack.c.l.b16 %v338
    %v641 = vunpack.c.l.b16 %v339
    %v642 = vunpack.c.l.b16 %v340
    %v643 = vunpack.c.l.b16 %v341
    %v644 = vunpack.c.l.b16 %v342
    %v645 = vunpack.c.l.b16 %v343
    %v646 = vunpack.c.l.b16 %v344
    %v647 = vunpack.c.l.b16 %v345
    %v648 = vunpack.c.l.b16 %v346
    %v649 = vunpack.c.l.b16 %v347
    %v650 = vunpack.c.l.b16 %v348
    %v651 = vunpack.c.l.b16 %v349
    %v652 = vunpack.c.l.b16 %v350
    %v653 = vunpack.c.l.b16 %v351
    %v654 = vunpack.c.l.b16 %v352
    %v655 = vunpack.c.l.b16 %v353
    %v656 = vunpack.c.l.b16 %v354
    %v657 = vunpack.c.l.b16 %v355
    %v658 = vunpack.c.l.b16 %v356
    %v659 = vunpack.c.l.b16 %v357
    %v660 = vunpack.c.l.b16 %v358
    %v661 = vunpack.c.l.b16 %v359
    %v662 = vunpack.c.l.b16 %v360
    %v663 = vunpack.c.l.b16 %v361
    %v664 = vunpack.c.l.b16 %v362
    %v665 = vunpack.c.l.b16 %v363
    %v666 = vunpack.c.l.b16 %v364
    %v667 = vunpack.c.l.b16 %v365
    %v668 = vunpack.c.l.b16 %v366
    %v669 = vunpack.c.l.b16 %v367
    %v670 = vunpack.c.l.b16 %v368
    %v671 = vunpack.c.l.b16 %v369
    %v672 = vunpack.c.l.b16 %v370
    %v673 = vunpack.c.l.b16 %v371
    %v674 = vunpack.c.l.b16 %v372
    %v675 = vunpack.c.l.b16 %v373
    %v676 = vunpack.c.l.b16 %v374
    %v677 = vunpack.c.l.b16 %v375
    %v678 = vunpack.c.l.b16 %v376
    %v679 = vunpack.c.l.b16 %v377
    %v680 = vunpack.c.l.b16 %v378
    %v681 = vunpack.c.l.b16 %v379
    %v682 = vunpack.c.l.b16 %v380
    %v683 = vpack.c.b16 %v533, %v532
    %v684 = vpack.c.b16 %v535, %v534
    %v685 = vpack.c.b16 %v537, %v536
    %v686 = vpack.c.b16 %v539, %v538
    %v687 = vpack.c.b16 %v541, %v540
    %v688 = vpack.c.b16 %v543, %v542
    %v689 = vpack.c.b16 %v545, %v544
    %v690 = vpack.c.b16 %v547, %v546
    %v691 = vpack.c.b16 %v549, %v548
    %v692 = vpack.c.b16 %v551, %v550
    %v693 = vpack.c.b16 %v553, %v552
    %v694 = vpack.c.b16 %v555, %v554
    %v695 = vpack.c.b16 %v557, %v556
    %v696 = vpack.c.b16 %v559, %v558
    %v697 = vpack.c.b16 %v561, %v560
    %v698 = vpack.c.b16 %v563, %v562
    %v699 = vpack.c.b16 %v565, %v564
    %v700 = vpack.c.b16 %v567, %v566
    %v701 = vpack.c.b16 %v569, %v568
    %v702 = vpack.c.b16 %v571, %v570
    %v703 = vpack.c.b16 %v573, %v572
    %v704 = vpack.c.b16 %v575, %v574
    %v705 = vpack.c.b16 %v577, %v576
    %v706 = vpack.c.b16 %v579, %v578
    %v707 = vpack.c.b16 %v581, %v580
    %v708 = vpack.c.b16 %v583, %v582
    %v709 = vpack.c.b16 %v585, %v584
    %v710 = vpack.c.b16 %v587, %v586
    %v711 = vpack.c.b16 %v589, %v588
    %v712 = vpack.c.b16 %v591, %v590
    %v713 = vpack.c.b16 %v593, %v592
    %v714 = vpack.c.b16 %v595, %v594
    %v715 = vpack.c.b16 %v597, %v596
    %v716 = vpack.c.b16 %v599, %v598
    %v717 = vpack.c.b16 %v601, %v600
    %v718 = vpack.c.b16 %v603, %v602
    %v719 = vpack.c.b16 %v605, %v604
    %v720 = vpack.c.b16 %v607, %v606
    %v721 = vpack.c.b16 %v609, %v608
    %v722 = vpack.c.b16 %v611, %v610
    %v723 = vpack.c.b16 %v613, %v612
    %v724 = vpack.c.b16 %v615, %v614
    %v725 = vpack.c.b16 %v617, %v616
    %v726 = vpack.c.b16 %v619, %v618
    %v727 = vpack.c.b16 %v621, %v620
    %v728 = vpack.c.b16 %v623, %v622
    %v729 = vpack.c.b16 %v625, %v624
    %v730 = vpack.c.b16 %v627, %v626
    %v731 = vpack.c.b16 %v629, %v628
    %v732 = vpack.c.b16 %v631, %v630
    %v733 = vpack.c.b16 %v633, %v632
    %v734 = vpack.c.b16 %v635, %v634
    %v735 = vpack.c.b16 %v637, %v636
    %v736 = vpack.c.b16 %v639, %v638
    %v737 = vpack.c.b16 %v641, %v640
    %v738 = vpack.c.b16 %v643, %v642
    %v739 = vpack.c.b16 %v645, %v644
    %v740 = vpack.c.b16 %v647, %v646
    %v741 = vpack.c.b16 %v649, %v648
    %v742 = vpack.c.b16 %v651, %v650
    %v743 = vpack.c.b16 %v653, %v652
    %v744 = vpack.c.b16 %v655, %v654
    %v745 = vpack.c.b16 %v657, %v656
    %v746 = vpack.c.b16 %v659, %v658
    %v747 = vpack.c.b16 %v661, %v660
    %v748 = vpack.c.b16 %v663, %v662
    %v749 = vpack.c.b16 %v665, %v664
    %v750 = vpack.c.b16 %v667, %v666
    %v751 = vpack.c.b16 %v669, %v668
    %v752 = vpack.c.b16 %v671, %v670
    %v753 = vpack.c.b16 %v673, %v672
    %v754 = vpack.c.b16 %v675, %v674
    %v755 = vpack.c.b16 %v677, %v676
    %v756 = vpack.c.b16 %v679, %v678
    %v757 = vpack.c.b16 %v681, %v680
    %v758 = vpack.c.b16 %v682, %v682
    %vm834 = vcmask 441344
    %v836 = vsel %vm834, %v229, 0
    %vm838 = vcmask 1042432
    %v840 = vsel %vm838, %v758, 0
    %842 = vmatprep.subr.bf16.mxu0 0
    %843 = vmatpush1.bf16.msra.mxu0 %v690
    %844 = vmatprep.subr.bf16.mxu0 0
    %845 = vmatpush1.bf16.msra.mxu0 %v689
    %846 = vmatprep.subr.bf16.mxu0 0
    %847 = vmatpush1.bf16.msra.mxu0 %v688
    %848 = vmatprep.subr.bf16.mxu0 0
    %849 = vmatpush1.bf16.msra.mxu0 %v687
    %850 = vmatprep.subr.bf16.mxu0 0
    %851 = vmatpush1.bf16.msra.mxu0 %v686
    %852 = vmatprep.subr.bf16.mxu0 0
    %853 = vmatpush1.bf16.msra.mxu0 %v685
    %854 = vmatprep.subr.bf16.mxu0 0
    %855 = vmatpush1.bf16.msra.mxu0 %v684
    %856 = vmatprep.subr.bf16.mxu0 0
    %857 = vmatpush1.bf16.msra.mxu0 %v683
    %858 = vmatprep.subr.bf16.mxu0 0
    %859 = vmatpush2.bf16.msra.mxu0 %v698
    %860 = vmatprep.subr.bf16.mxu0 0
    %861 = vmatpush2.bf16.msra.mxu0 %v697
    %862 = vmatprep.subr.bf16.mxu0 0
    %863 = vmatpush2.bf16.msra.mxu0 %v696
    %864 = vmatprep.subr.bf16.mxu0 0
    %865 = vmatpush2.bf16.msra.mxu0 %v695
    %866 = vmatprep.subr.bf16.mxu0 0
    %867 = vmatpush2.bf16.msra.mxu0 %v694
    %868 = vmatprep.subr.bf16.mxu0 0
    %869 = vmatpush2.bf16.msra.mxu0 %v693
    %870 = vmatprep.subr.bf16.mxu0 0
    %871 = vmatpush2.bf16.msra.mxu0 %v692
    %872 = vmatprep.subr.bf16.mxu0 0
    %873 = vmatpush2.bf16.msra.mxu0 %v691
    %874 = vmatprep.mubr.bf16.mxu0 %v221
    %875 = vmatmul.mubr.bf16.gmra.mxu0 %v220
    %v876 = vpop.f32.mrf.mxu0
    %v877 = vadd.f32 0.0, %v876
    %v878 = vpop.f32.mrf.mxu0
    %v879 = vpop.f32.mrf.mxu0
    %v880 = vpop.f32.mrf.mxu0
    %881 = vdwg.mxu0
    %882 = vmatprep.subr.bf16.mxu0 0
    %883 = vmatpush1.bf16.msra.mxu0 %v706
    %884 = vmatprep.subr.bf16.mxu0 0
    %885 = vmatpush1.bf16.msra.mxu0 %v705
    %886 = vmatprep.subr.bf16.mxu0 0
    %887 = vmatpush1.bf16.msra.mxu0 %v704
    %888 = vmatprep.subr.bf16.mxu0 0
    %889 = vmatpush1.bf16.msra.mxu0 %v703
    %890 = vmatprep.subr.bf16.mxu0 0
    %891 = vmatpush1.bf16.msra.mxu0 %v702
    %892 = vmatprep.subr.bf16.mxu0 0
    %893 = vmatpush1.bf16.msra.mxu0 %v701
    %894 = vmatprep.subr.bf16.mxu0 0
    %895 = vmatpush1.bf16.msra.mxu0 %v700
    %896 = vmatprep.subr.bf16.mxu0 0
    %897 = vmatpush1.bf16.msra.mxu0 %v699
    %898 = vmatprep.subr.bf16.mxu0 0
    %899 = vmatpush2.bf16.msra.mxu0 %v714
    %900 = vmatprep.subr.bf16.mxu0 0
    %901 = vmatpush2.bf16.msra.mxu0 %v713
    %902 = vmatprep.subr.bf16.mxu0 0
    %903 = vmatpush2.bf16.msra.mxu0 %v712
    %904 = vmatprep.subr.bf16.mxu0 0
    %905 = vmatpush2.bf16.msra.mxu0 %v711
    %906 = vmatprep.subr.bf16.mxu0 0
    %907 = vmatpush2.bf16.msra.mxu0 %v710
    %908 = vmatprep.subr.bf16.mxu0 0
    %909 = vmatpush2.bf16.msra.mxu0 %v709
    %910 = vmatprep.subr.bf16.mxu0 0
    %911 = vmatpush2.bf16.msra.mxu0 %v708
    %912 = vmatprep.subr.bf16.mxu0 0
    %913 = vmatpush2.bf16.msra.mxu0 %v707
    %914 = vmatprep.mubr.bf16.mxu0 %v223
    %915 = vmatmul.mubr.bf16.gmra.mxu0 %v222
    %v916 = vpop.f32.mrf.mxu0
    %v917 = vadd.f32 %v877, %v916
    %v918 = vpop.f32.mrf.mxu0
    %v919 = vpop.f32.mrf.mxu0
    %v920 = vpop.f32.mrf.mxu0
    %921 = vdwg.mxu0
    %922 = vmatprep.subr.bf16.mxu0 0
    %923 = vmatpush1.bf16.msra.mxu0 %v722
    %924 = vmatprep.subr.bf16.mxu0 0
    %925 = vmatpush1.bf16.msra.mxu0 %v721
    %926 = vmatprep.subr.bf16.mxu0 0
    %927 = vmatpush1.bf16.msra.mxu0 %v720
    %928 = vmatprep.subr.bf16.mxu0 0
    %929 = vmatpush1.bf16.msra.mxu0 %v719
    %930 = vmatprep.subr.bf16.mxu0 0
    %931 = vmatpush1.bf16.msra.mxu0 %v718
    %932 = vmatprep.subr.bf16.mxu0 0
    %933 = vmatpush1.bf16.msra.mxu0 %v717
    %934 = vmatprep.subr.bf16.mxu0 0
    %935 = vmatpush1.bf16.msra.mxu0 %v716
    %936 = vmatprep.subr.bf16.mxu0 0
    %937 = vmatpush1.bf16.msra.mxu0 %v715
    %938 = vmatprep.subr.bf16.mxu0 0
    %939 = vmatpush2.bf16.msra.mxu0 %v730
    %940 = vmatprep.subr.bf16.mxu0 0
    %941 = vmatpush2.bf16.msra.mxu0 %v729
    %942 = vmatprep.subr.bf16.mxu0 0
    %943 = vmatpush2.bf16.msra.mxu0 %v728
    %944 = vmatprep.subr.bf16.mxu0 0
    %945 = vmatpush2.bf16.msra.mxu0 %v727
    %946 = vmatprep.subr.bf16.mxu0 0
    %947 = vmatpush2.bf16.msra.mxu0 %v726
    %948 = vmatprep.subr.bf16.mxu0 0
    %949 = vmatpush2.bf16.msra.mxu0 %v725
    %950 = vmatprep.subr.bf16.mxu0 0
    %951 = vmatpush2.bf16.msra.mxu0 %v724
    %952 = vmatprep.subr.bf16.mxu0 0
    %953 = vmatpush2.bf16.msra.mxu0 %v723
    %954 = vmatprep.mubr.bf16.mxu0 %v225
    %955 = vmatmul.mubr.bf16.gmra.mxu0 %v224
    %v956 = vpop.f32.mrf.mxu0
    %v957 = vadd.f32 %v917, %v956
    %v958 = vpop.f32.mrf.mxu0
    %v959 = vpop.f32.mrf.mxu0
    %v960 = vpop.f32.mrf.mxu0
    %961 = vdwg.mxu0
    %962 = vmatprep.subr.bf16.mxu0 0
    %963 = vmatpush1.bf16.msra.mxu0 %v738
    %964 = vmatprep.subr.bf16.mxu0 0
    %965 = vmatpush1.bf16.msra.mxu0 %v737
    %966 = vmatprep.subr.bf16.mxu0 0
    %967 = vmatpush1.bf16.msra.mxu0 %v736
    %968 = vmatprep.subr.bf16.mxu0 0
    %969 = vmatpush1.bf16.msra.mxu0 %v735
    %970 = vmatprep.subr.bf16.mxu0 0
    %971 = vmatpush1.bf16.msra.mxu0 %v734
    %972 = vmatprep.subr.bf16.mxu0 0
    %973 = vmatpush1.bf16.msra.mxu0 %v733
    %974 = vmatprep.subr.bf16.mxu0 0
    %975 = vmatpush1.bf16.msra.mxu0 %v732
    %976 = vmatprep.subr.bf16.mxu0 0
    %977 = vmatpush1.bf16.msra.mxu0 %v731
    %978 = vmatprep.subr.bf16.mxu0 0
    %979 = vmatpush2.bf16.msra.mxu0 %v746
    %980 = vmatprep.subr.bf16.mxu0 0
    %981 = vmatpush2.bf16.msra.mxu0 %v745
    %982 = vmatprep.subr.bf16.mxu0 0
    %983 = vmatpush2.bf16.msra.mxu0 %v744
    %984 = vmatprep.subr.bf16.mxu0 0
    %985 = vmatpush2.bf16.msra.mxu0 %v743
    %986 = vmatprep.subr.bf16.mxu0 0
    %987 = vmatpush2.bf16.msra.mxu0 %v742
    %988 = vmatprep.subr.bf16.mxu0 0
    %989 = vmatpush2.bf16.msra.mxu0 %v741
    %990 = vmatprep.subr.bf16.mxu0 0
    %991 = vmatpush2.bf16.msra.mxu0 %v740
    %992 = vmatprep.subr.bf16.mxu0 0
    %993 = vmatpush2.bf16.msra.mxu0 %v739
    %994 = vmatprep.mubr.bf16.mxu0 %v227
    %995 = vmatmul.mubr.bf16.gmra.mxu0 %v226
    %v996 = vpop.f32.mrf.mxu0
    %v997 = vadd.f32 %v957, %v996
    %v998 = vpop.f32.mrf.mxu0
    %v999 = vpop.f32.mrf.mxu0
    %v1000 = vpop.f32.mrf.mxu0
    %1001 = vdwg.mxu0
    %1002 = vmatprep.subr.bf16.mxu0 0
    %1003 = vmatpush1.bf16.msra.mxu0 %v754
    %1004 = vmatprep.subr.bf16.mxu0 0
    %1005 = vmatpush1.bf16.msra.mxu0 %v753
    %1006 = vmatprep.subr.bf16.mxu0 0
    %1007 = vmatpush1.bf16.msra.mxu0 %v752
    %1008 = vmatprep.subr.bf16.mxu0 0
    %1009 = vmatpush1.bf16.msra.mxu0 %v751
    %1010 = vmatprep.subr.bf16.mxu0 0
    %1011 = vmatpush1.bf16.msra.mxu0 %v750
    %1012 = vmatprep.subr.bf16.mxu0 0
    %1013 = vmatpush1.bf16.msra.mxu0 %v749
    %1014 = vmatprep.subr.bf16.mxu0 0
    %1015 = vmatpush1.bf16.msra.mxu0 %v748
    %1016 = vmatprep.subr.bf16.mxu0 0
    %1017 = vmatpush1.bf16.msra.mxu0 %v747
    %1018 = vmatprep.subr.bf16.mxu0 0
    %1019 = vmatpush2.bf16.msra.mxu0 0
    %1020 = vmatprep.subr.bf16.mxu0 0
    %1021 = vmatpush2.bf16.msra.mxu0 0
    %1022 = vmatprep.subr.bf16.mxu0 0
    %1023 = vmatpush2.bf16.msra.mxu0 0
    %1024 = vmatprep.subr.bf16.mxu0 0
    %1025 = vmatpush2.bf16.msra.mxu0 0
    %1026 = vmatprep.subr.bf16.mxu0 0
    %1027 = vmatpush2.bf16.msra.mxu0 %v840
    %1028 = vmatprep.subr.bf16.mxu0 0
    %1029 = vmatpush2.bf16.msra.mxu0 %v757
    %1030 = vmatprep.subr.bf16.mxu0 0
    %1031 = vmatpush2.bf16.msra.mxu0 %v756
    %1032 = vmatprep.subr.bf16.mxu0 0
    %1033 = vmatpush2.bf16.msra.mxu0 %v755
    %1034 = vmatprep.mubr.bf16.mxu0 %v836
    %1035 = vmatmul.mubr.bf16.gmra.mxu0 %v228
    %v1036 = vpop.f32.mrf.mxu0
    %v1037 = vadd.f32 %v997, %v1036
    %v1038 = vpop.f32.mrf.mxu0
    %v1039 = vpop.f32.mrf.mxu0
    %v1040 = vpop.f32.mrf.mxu0
    %1041 = vdwg.mxu0
    %v1042 = vmax.f32 %v1037, 0.0
    %v1043 = vpack.c.bf16 %v1042, %v1042
    %v1044 = vld [vmem:[%s4] sm:$0xf]
    %v1045 = vld [vmem:[%s4 + $0x4] sm:$0xf]
    %v1046 = vld [vmem:[%s4 + $0x8] sm:$0xf]
    %v1047 = vld [vmem:[%s4 + $0xc] sm:$0xf]
    %v1048 = vld [vmem:[%s4 + $0x10] sm:$0xf]
    %v1049 = vld [vmem:[%s4 + $0x14] sm:$0xf]
    %v1050 = vld [vmem:[%s4 + $0x18] sm:$0xf]
    %v1051 = vld [vmem:[%s4 + $0x1c] sm:$0xf]
    %v1052 = vld [vmem:[%s4 + $0x20] sm:$0xf]
    %v1053 = vld [vmem:[%s4 + $0x24] sm:$0xf]
    %v1054 = vld [vmem:[%s4 + $0x28] sm:$0xf]
    %v1055 = vld [vmem:[%s4 + $0x2c] sm:$0xf]
    %v1056 = vld [vmem:[%s4 + $0x30] sm:$0xf]
    %v1057 = vld [vmem:[%s4 + $0x34] sm:$0xf]
    %v1058 = vld [vmem:[%s4 + $0x38] sm:$0xf]
    %v1059 = vld [vmem:[%s4 + $0x3c] sm:$0xf]
    %v1060 = vld [vmem:[%s5] sm:$0x1]
    %v1062 = vlaneseq
    %v1063 = vshrl.u32 %v1062, 7
    %v1064 = vsub.s32 0, %v1063
    %v1065 = vrot.slane %v1060, %v1064
    %v1083 = vunpack.c.l.b16 %v1044
    %v1084 = vunpack.c.l.b16 %v1045
    %v1085 = vunpack.c.l.b16 %v1046
    %v1086 = vunpack.c.l.b16 %v1047
    %v1087 = vunpack.c.l.b16 %v1048
    %v1088 = vunpack.c.l.b16 %v1049
    %v1089 = vunpack.c.l.b16 %v1050
    %v1090 = vunpack.c.l.b16 %v1051
    %v1091 = vunpack.c.l.b16 %v1052
    %v1092 = vunpack.c.l.b16 %v1053
    %v1093 = vunpack.c.l.b16 %v1054
    %v1094 = vunpack.c.l.b16 %v1055
    %v1095 = vunpack.c.l.b16 %v1056
    %v1096 = vunpack.c.l.b16 %v1057
    %v1097 = vunpack.c.l.b16 %v1058
    %v1098 = vunpack.c.l.b16 %v1059
    %v1099 = vpack.c.b16 %v1084, %v1083
    %v1100 = vpack.c.b16 %v1086, %v1085
    %v1101 = vpack.c.b16 %v1088, %v1087
    %v1102 = vpack.c.b16 %v1090, %v1089
    %v1103 = vpack.c.b16 %v1092, %v1091
    %v1104 = vpack.c.b16 %v1094, %v1093
    %v1105 = vpack.c.b16 %v1096, %v1095
    %v1106 = vpack.c.b16 %v1098, %v1097
    %1115 = vmatprep.subr.bf16.mxu0 0
    %1116 = vmatpush1.bf16.msra.mxu0 %v1106
    %1117 = vmatprep.subr.bf16.mxu0 0
    %1118 = vmatpush1.bf16.msra.mxu0 %v1105
    %1119 = vmatprep.subr.bf16.mxu0 0
    %1120 = vmatpush1.bf16.msra.mxu0 %v1104
    %1121 = vmatprep.subr.bf16.mxu0 0
    %1122 = vmatpush1.bf16.msra.mxu0 %v1103
    %1123 = vmatprep.subr.bf16.mxu0 0
    %1124 = vmatpush1.bf16.msra.mxu0 %v1102
    %1125 = vmatprep.subr.bf16.mxu0 0
    %1126 = vmatpush1.bf16.msra.mxu0 %v1101
    %1127 = vmatprep.subr.bf16.mxu0 0
    %1128 = vmatpush1.bf16.msra.mxu0 %v1100
    %1129 = vmatprep.subr.bf16.mxu0 0
    %1130 = vmatpush1.bf16.msra.mxu0 %v1099
    %1131 = vmatprep.subr.bf16.mxu0 0
    %1132 = vmatpush2.bf16.msra.mxu0 0
    %1133 = vmatprep.subr.bf16.mxu0 0
    %1134 = vmatpush2.bf16.msra.mxu0 0
    %1135 = vmatprep.subr.bf16.mxu0 0
    %1136 = vmatpush2.bf16.msra.mxu0 0
    %1137 = vmatprep.subr.bf16.mxu0 0
    %1138 = vmatpush2.bf16.msra.mxu0 0
    %1139 = vmatprep.subr.bf16.mxu0 0
    %1140 = vmatpush2.bf16.msra.mxu0 0
    %1141 = vmatprep.subr.bf16.mxu0 0
    %1142 = vmatpush2.bf16.msra.mxu0 0
    %1143 = vmatprep.subr.bf16.mxu0 0
    %1144 = vmatpush2.bf16.msra.mxu0 0
    %1145 = vmatprep.subr.bf16.mxu0 0
    %1146 = vmatpush2.bf16.msra.mxu0 0
    %1147 = vmatprep.mubr.bf16.mxu0 0
    %1148 = vmatmul.mubr.bf16.gmra.mxu0 %v1043
    %v1149 = vpop.f32.mrf.mxu0
    %v1150 = vadd.f32 %v1065, %v1149
    %v1151 = vpop.f32.mrf.mxu0
    %v1152 = vpop.f32.mrf.mxu0
    %v1153 = vpop.f32.mrf.mxu0
    %1154 = vdwg.mxu0
    %v1155 = vmax.f32 %v1150, 0.0
    %v1156 = vld [vmem:[#allocation2] sm:$0xff]
    %v1157 = vld [vmem:[#allocation2 + $0x8] sm:$0xff]
    %v1160 = vcombine.high %v1156, %v1156
    %v1162 = vunpack.c.l.s4 1983009808
    %v1163 = vunpack.c.0.s8 %v1162
    %v1164 = vlaneseq
    %v1165 = vshrl.u32 %v1164, 7
    %v1166 = vsub.s32 %v1163, %v1165
    %v1167 = vrot.slane %v1156, %v1166
    %v1169 = vunpack.c.l.s4 1983009808
    %v1170 = vunpack.c.0.s8 %v1169
    %v1171 = vlaneseq
    %v1172 = vshrl.u32 %v1171, 7
    %v1173 = vsub.s32 %v1170, %v1172
    %v1174 = vrot.slane %v1160, %v1173
    %v1175 = vcombine.high %v1167, %v1167
    %v1176 = vcombine.high %v1174, %v1174
    %v1177 = vcombine.high %v1157, %v1157
    %v1179 = vunpack.c.l.s4 1983009808
    %v1180 = vunpack.c.0.s8 %v1179
    %v1181 = vlaneseq
    %v1182 = vshrl.u32 %v1181, 7
    %v1183 = vsub.s32 %v1180, %v1182
    %v1184 = vrot.slane %v1157, %v1183
    %v1186 = vunpack.c.l.s4 1983009808
    %v1187 = vunpack.c.0.s8 %v1186
    %v1188 = vlaneseq
    %v1189 = vshrl.u32 %v1188, 7
    %v1190 = vsub.s32 %v1187, %v1189
    %v1191 = vrot.slane %v1177, %v1190
    %v1192 = vcombine.high %v1184, %v1184
    %v1193 = vcombine.high %v1191, %v1191
    %v1202 = vpack.c.bf16 %v1167, %v1167
    %v1203 = vpack.c.bf16 %v1175, %v1175
    %v1204 = vpack.c.bf16 %v1174, %v1174
    %v1205 = vpack.c.bf16 %v1176, %v1176
    %v1206 = vpack.c.bf16 %v1184, %v1184
    %v1207 = vpack.c.bf16 %v1192, %v1192
    %v1208 = vpack.c.bf16 %v1191, %v1191
    %v1209 = vpack.c.bf16 %v1193, %v1193
    %v1210 = vld [vmem:[%s6] sm:$0xf]
    %v1211 = vld [vmem:[%s6 + $0x4] sm:$0xf]
    %v1212 = vld [vmem:[%s6 + $0x8] sm:$0xf]
    %v1213 = vld [vmem:[%s6 + $0xc] sm:$0xf]
    %v1214 = vld [vmem:[%s6 + $0x10] sm:$0xf]
    %v1215 = vld [vmem:[%s6 + $0x14] sm:$0xf]
    %v1216 = vld [vmem:[%s6 + $0x18] sm:$0xf]
    %v1217 = vld [vmem:[%s6 + $0x1c] sm:$0xf]
    %v1218 = vld [vmem:[%s6 + $0x20] sm:$0xf]
    %v1219 = vld [vmem:[%s6 + $0x24] sm:$0xf]
    %v1220 = vld [vmem:[%s6 + $0x28] sm:$0xf]
    %v1221 = vld [vmem:[%s6 + $0x2c] sm:$0xf]
    %v1222 = vld [vmem:[%s6 + $0x30] sm:$0xf]
    %v1223 = vld [vmem:[%s6 + $0x34] sm:$0xf]
    %v1224 = vld [vmem:[%s6 + $0x38] sm:$0xf]
    %v1225 = vld [vmem:[%s6 + $0x3c] sm:$0xf]
    %v1226 = vld [vmem:[%s6 + $0x40] sm:$0xf]
    %v1227 = vld [vmem:[%s6 + $0x44] sm:$0xf]
    %v1228 = vld [vmem:[%s6 + $0x48] sm:$0xf]
    %v1229 = vld [vmem:[%s6 + $0x4c] sm:$0xf]
    %v1230 = vld [vmem:[%s6 + $0x50] sm:$0xf]
    %v1231 = vld [vmem:[%s6 + $0x54] sm:$0xf]
    %v1232 = vld [vmem:[%s6 + $0x58] sm:$0xf]
    %v1233 = vld [vmem:[%s6 + $0x5c] sm:$0xf]
    %v1234 = vld [vmem:[%s6 + $0x60] sm:$0xf]
    %v1235 = vld [vmem:[%s6 + $0x64] sm:$0xf]
    %v1236 = vld [vmem:[%s6 + $0x68] sm:$0xf]
    %v1237 = vld [vmem:[%s6 + $0x6c] sm:$0xf]
    %v1238 = vld [vmem:[%s6 + $0x70] sm:$0xf]
    %v1239 = vld [vmem:[%s6 + $0x74] sm:$0xf]
    %v1240 = vld [vmem:[%s6 + $0x78] sm:$0xf]
    %v1241 = vld [vmem:[%s6 + $0x7c] sm:$0xf]
    %v1242 = vld [vmem:[%s6 + $0x80] sm:$0xf]
    %v1243 = vld [vmem:[%s6 + $0x84] sm:$0xf]
    %v1244 = vld [vmem:[%s6 + $0x88] sm:$0xf]
    %v1245 = vld [vmem:[%s6 + $0x8c] sm:$0xf]
    %v1246 = vld [vmem:[%s6 + $0x90] sm:$0xf]
    %v1247 = vld [vmem:[%s6 + $0x94] sm:$0xf]
    %v1248 = vld [vmem:[%s6 + $0x98] sm:$0xf]
    %v1249 = vld [vmem:[%s6 + $0x9c] sm:$0xf]
    %v1250 = vld [vmem:[%s6 + $0xa0] sm:$0xf]
    %v1251 = vld [vmem:[%s6 + $0xa4] sm:$0xf]
    %v1252 = vld [vmem:[%s6 + $0xa8] sm:$0xf]
    %v1253 = vld [vmem:[%s6 + $0xac] sm:$0xf]
    %v1254 = vld [vmem:[%s6 + $0xb0] sm:$0xf]
    %v1255 = vld [vmem:[%s6 + $0xb4] sm:$0xf]
    %v1256 = vld [vmem:[%s6 + $0xb8] sm:$0xf]
    %v1257 = vld [vmem:[%s6 + $0xbc] sm:$0xf]
    %v1258 = vld [vmem:[%s6 + $0xc0] sm:$0xf]
    %v1259 = vld [vmem:[%s6 + $0xc4] sm:$0xf]
    %v1260 = vld [vmem:[%s6 + $0xc8] sm:$0xf]
    %v1261 = vld [vmem:[%s6 + $0xcc] sm:$0xf]
    %v1262 = vld [vmem:[%s6 + $0xd0] sm:$0xf]
    %v1263 = vld [vmem:[%s6 + $0xd4] sm:$0xf]
    %v1264 = vld [vmem:[%s6 + $0xd8] sm:$0xf]
    %v1265 = vld [vmem:[%s6 + $0xdc] sm:$0xf]
    %v1266 = vld [vmem:[%s6 + $0xe0] sm:$0xf]
    %v1267 = vld [vmem:[%s6 + $0xe4] sm:$0xf]
    %v1268 = vld [vmem:[%s6 + $0xe8] sm:$0xf]
    %v1269 = vld [vmem:[%s6 + $0xec] sm:$0xf]
    %v1270 = vld [vmem:[%s6 + $0xf0] sm:$0xf]
    %v1271 = vld [vmem:[%s6 + $0xf4] sm:$0xf]
    %v1272 = vld [vmem:[%s6 + $0xf8] sm:$0xf]
    %v1273 = vld [vmem:[%s6 + $0xfc] sm:$0xf]
    %v1274 = vld [vmem:[%s6 + $0x100] sm:$0xf]
    %v1275 = vld [vmem:[%s6 + $0x104] sm:$0xf]
    %v1276 = vld [vmem:[%s6 + $0x108] sm:$0xf]
    %v1277 = vld [vmem:[%s6 + $0x10c] sm:$0xf]
    %v1278 = vld [vmem:[%s6 + $0x110] sm:$0xf]
    %v1279 = vld [vmem:[%s6 + $0x114] sm:$0xf]
    %v1280 = vld [vmem:[%s6 + $0x118] sm:$0xf]
    %v1281 = vld [vmem:[%s6 + $0x11c] sm:$0xf]
    %v1282 = vld [vmem:[%s6 + $0x120] sm:$0xf]
    %v1283 = vld [vmem:[%s6 + $0x124] sm:$0xf]
    %v1284 = vld [vmem:[%s6 + $0x128] sm:$0xf]
    %v1285 = vld [vmem:[%s6 + $0x12c] sm:$0xf]
    %v1286 = vld [vmem:[%s6 + $0x130] sm:$0xf]
    %v1287 = vld [vmem:[%s6 + $0x134] sm:$0xf]
    %v1288 = vld [vmem:[%s6 + $0x138] sm:$0xf]
    %v1289 = vld [vmem:[%s6 + $0x13c] sm:$0xf]
    %v1290 = vld [vmem:[%s6 + $0x140] sm:$0xf]
    %v1291 = vld [vmem:[%s6 + $0x144] sm:$0xf]
    %v1292 = vld [vmem:[%s6 + $0x148] sm:$0xf]
    %v1293 = vld [vmem:[%s6 + $0x14c] sm:$0xf]
    %v1294 = vld [vmem:[%s6 + $0x150] sm:$0xf]
    %v1295 = vld [vmem:[%s6 + $0x154] sm:$0xf]
    %v1296 = vld [vmem:[%s6 + $0x158] sm:$0xf]
    %v1297 = vld [vmem:[%s6 + $0x15c] sm:$0xf]
    %v1298 = vld [vmem:[%s6 + $0x160] sm:$0xf]
    %v1299 = vld [vmem:[%s6 + $0x164] sm:$0xf]
    %v1300 = vld [vmem:[%s6 + $0x168] sm:$0xf]
    %v1301 = vld [vmem:[%s6 + $0x16c] sm:$0xf]
    %v1302 = vld [vmem:[%s6 + $0x170] sm:$0xf]
    %v1303 = vld [vmem:[%s6 + $0x174] sm:$0xf]
    %v1304 = vld [vmem:[%s6 + $0x178] sm:$0xf]
    %v1305 = vld [vmem:[%s6 + $0x17c] sm:$0xf]
    %v1306 = vld [vmem:[%s6 + $0x180] sm:$0xf]
    %v1307 = vld [vmem:[%s6 + $0x184] sm:$0xf]
    %v1308 = vld [vmem:[%s6 + $0x188] sm:$0xf]
    %v1309 = vld [vmem:[%s6 + $0x18c] sm:$0xf]
    %v1310 = vld [vmem:[%s6 + $0x190] sm:$0xf]
    %v1311 = vld [vmem:[%s6 + $0x194] sm:$0xf]
    %v1312 = vld [vmem:[%s6 + $0x198] sm:$0xf]
    %v1313 = vld [vmem:[%s6 + $0x19c] sm:$0xf]
    %v1314 = vld [vmem:[%s6 + $0x1a0] sm:$0xf]
    %v1315 = vld [vmem:[%s6 + $0x1a4] sm:$0xf]
    %v1316 = vld [vmem:[%s6 + $0x1a8] sm:$0xf]
    %v1317 = vld [vmem:[%s6 + $0x1ac] sm:$0xf]
    %v1318 = vld [vmem:[%s6 + $0x1b0] sm:$0xf]
    %v1319 = vld [vmem:[%s6 + $0x1b4] sm:$0xf]
    %v1320 = vld [vmem:[%s6 + $0x1b8] sm:$0xf]
    %v1321 = vld [vmem:[%s6 + $0x1bc] sm:$0xf]
    %v1322 = vld [vmem:[%s6 + $0x1c0] sm:$0x3]
    %v1436 = vunpack.c.l.b16 %v1210
    %v1437 = vunpack.c.l.b16 %v1211
    %v1438 = vunpack.c.l.b16 %v1212
    %v1439 = vunpack.c.l.b16 %v1213
    %v1440 = vunpack.c.l.b16 %v1214
    %v1441 = vunpack.c.l.b16 %v1215
    %v1442 = vunpack.c.l.b16 %v1216
    %v1443 = vunpack.c.l.b16 %v1217
    %v1444 = vunpack.c.l.b16 %v1218
    %v1445 = vunpack.c.l.b16 %v1219
    %v1446 = vunpack.c.l.b16 %v1220
    %v1447 = vunpack.c.l.b16 %v1221
    %v1448 = vunpack.c.l.b16 %v1222
    %v1449 = vunpack.c.l.b16 %v1223
    %v1450 = vunpack.c.l.b16 %v1224
    %v1451 = vunpack.c.l.b16 %v1225
    %v1452 = vunpack.c.l.b16 %v1226
    %v1453 = vunpack.c.l.b16 %v1227
    %v1454 = vunpack.c.l.b16 %v1228
    %v1455 = vunpack.c.l.b16 %v1229
    %v1456 = vunpack.c.l.b16 %v1230
    %v1457 = vunpack.c.l.b16 %v1231
    %v1458 = vunpack.c.l.b16 %v1232
    %v1459 = vunpack.c.l.b16 %v1233
    %v1460 = vunpack.c.l.b16 %v1234
    %v1461 = vunpack.c.l.b16 %v1235
    %v1462 = vunpack.c.l.b16 %v1236
    %v1463 = vunpack.c.l.b16 %v1237
    %v1464 = vunpack.c.l.b16 %v1238
    %v1465 = vunpack.c.l.b16 %v1239
    %v1466 = vunpack.c.l.b16 %v1240
    %v1467 = vunpack.c.l.b16 %v1241
    %v1468 = vunpack.c.l.b16 %v1242
    %v1469 = vunpack.c.l.b16 %v1243
    %v1470 = vunpack.c.l.b16 %v1244
    %v1471 = vunpack.c.l.b16 %v1245
    %v1472 = vunpack.c.l.b16 %v1246
    %v1473 = vunpack.c.l.b16 %v1247
    %v1474 = vunpack.c.l.b16 %v1248
    %v1475 = vunpack.c.l.b16 %v1249
    %v1476 = vunpack.c.l.b16 %v1250
    %v1477 = vunpack.c.l.b16 %v1251
    %v1478 = vunpack.c.l.b16 %v1252
    %v1479 = vunpack.c.l.b16 %v1253
    %v1480 = vunpack.c.l.b16 %v1254
    %v1481 = vunpack.c.l.b16 %v1255
    %v1482 = vunpack.c.l.b16 %v1256
    %v1483 = vunpack.c.l.b16 %v1257
    %v1484 = vunpack.c.l.b16 %v1258
    %v1485 = vunpack.c.l.b16 %v1259
    %v1486 = vunpack.c.l.b16 %v1260
    %v1487 = vunpack.c.l.b16 %v1261
    %v1488 = vunpack.c.l.b16 %v1262
    %v1489 = vunpack.c.l.b16 %v1263
    %v1490 = vunpack.c.l.b16 %v1264
    %v1491 = vunpack.c.l.b16 %v1265
    %v1492 = vunpack.c.l.b16 %v1266
    %v1493 = vunpack.c.l.b16 %v1267
    %v1494 = vunpack.c.l.b16 %v1268
    %v1495 = vunpack.c.l.b16 %v1269
    %v1496 = vunpack.c.l.b16 %v1270
    %v1497 = vunpack.c.l.b16 %v1271
    %v1498 = vunpack.c.l.b16 %v1272
    %v1499 = vunpack.c.l.b16 %v1273
    %v1500 = vunpack.c.l.b16 %v1274
    %v1501 = vunpack.c.l.b16 %v1275
    %v1502 = vunpack.c.l.b16 %v1276
    %v1503 = vunpack.c.l.b16 %v1277
    %v1504 = vunpack.c.l.b16 %v1278
    %v1505 = vunpack.c.l.b16 %v1279
    %v1506 = vunpack.c.l.b16 %v1280
    %v1507 = vunpack.c.l.b16 %v1281
    %v1508 = vunpack.c.l.b16 %v1282
    %v1509 = vunpack.c.l.b16 %v1283
    %v1510 = vunpack.c.l.b16 %v1284
    %v1511 = vunpack.c.l.b16 %v1285
    %v1512 = vunpack.c.l.b16 %v1286
    %v1513 = vunpack.c.l.b16 %v1287
    %v1514 = vunpack.c.l.b16 %v1288
    %v1515 = vunpack.c.l.b16 %v1289
    %v1516 = vunpack.c.l.b16 %v1290
    %v1517 = vunpack.c.l.b16 %v1291
    %v1518 = vunpack.c.l.b16 %v1292
    %v1519 = vunpack.c.l.b16 %v1293
    %v1520 = vunpack.c.l.b16 %v1294
    %v1521 = vunpack.c.l.b16 %v1295
    %v1522 = vunpack.c.l.b16 %v1296
    %v1523 = vunpack.c.l.b16 %v1297
    %v1524 = vunpack.c.l.b16 %v1298
    %v1525 = vunpack.c.l.b16 %v1299
    %v1526 = vunpack.c.l.b16 %v1300
    %v1527 = vunpack.c.l.b16 %v1301
    %v1528 = vunpack.c.l.b16 %v1302
    %v1529 = vunpack.c.l.b16 %v1303
    %v1530 = vunpack.c.l.b16 %v1304
    %v1531 = vunpack.c.l.b16 %v1305
    %v1532 = vunpack.c.l.b16 %v1306
    %v1533 = vunpack.c.l.b16 %v1307
    %v1534 = vunpack.c.l.b16 %v1308
    %v1535 = vunpack.c.l.b16 %v1309
    %v1536 = vunpack.c.l.b16 %v1310
    %v1537 = vunpack.c.l.b16 %v1311
    %v1538 = vunpack.c.l.b16 %v1312
    %v1539 = vunpack.c.l.b16 %v1313
    %v1540 = vunpack.c.l.b16 %v1314
    %v1541 = vunpack.c.l.b16 %v1315
    %v1542 = vunpack.c.l.b16 %v1316
    %v1543 = vunpack.c.l.b16 %v1317
    %v1544 = vunpack.c.l.b16 %v1318
    %v1545 = vunpack.c.l.b16 %v1319
    %v1546 = vunpack.c.l.b16 %v1320
    %v1547 = vunpack.c.l.b16 %v1321
    %v1548 = vunpack.c.l.b16 %v1322
    %v1549 = vpack.c.b16 %v1437, %v1436
    %v1550 = vpack.c.b16 %v1439, %v1438
    %v1551 = vpack.c.b16 %v1441, %v1440
    %v1552 = vpack.c.b16 %v1443, %v1442
    %v1553 = vpack.c.b16 %v1445, %v1444
    %v1554 = vpack.c.b16 %v1447, %v1446
    %v1555 = vpack.c.b16 %v1449, %v1448
    %v1556 = vpack.c.b16 %v1451, %v1450
    %v1557 = vpack.c.b16 %v1453, %v1452
    %v1558 = vpack.c.b16 %v1455, %v1454
    %v1559 = vpack.c.b16 %v1457, %v1456
    %v1560 = vpack.c.b16 %v1459, %v1458
    %v1561 = vpack.c.b16 %v1461, %v1460
    %v1562 = vpack.c.b16 %v1463, %v1462
    %v1563 = vpack.c.b16 %v1465, %v1464
    %v1564 = vpack.c.b16 %v1467, %v1466
    %v1565 = vpack.c.b16 %v1469, %v1468
    %v1566 = vpack.c.b16 %v1471, %v1470
    %v1567 = vpack.c.b16 %v1473, %v1472
    %v1568 = vpack.c.b16 %v1475, %v1474
    %v1569 = vpack.c.b16 %v1477, %v1476
    %v1570 = vpack.c.b16 %v1479, %v1478
    %v1571 = vpack.c.b16 %v1481, %v1480
    %v1572 = vpack.c.b16 %v1483, %v1482
    %v1573 = vpack.c.b16 %v1485, %v1484
    %v1574 = vpack.c.b16 %v1487, %v1486
    %v1575 = vpack.c.b16 %v1489, %v1488
    %v1576 = vpack.c.b16 %v1491, %v1490
    %v1577 = vpack.c.b16 %v1493, %v1492
    %v1578 = vpack.c.b16 %v1495, %v1494
    %v1579 = vpack.c.b16 %v1497, %v1496
    %v1580 = vpack.c.b16 %v1499, %v1498
    %v1581 = vpack.c.b16 %v1501, %v1500
    %v1582 = vpack.c.b16 %v1503, %v1502
    %v1583 = vpack.c.b16 %v1505, %v1504
    %v1584 = vpack.c.b16 %v1507, %v1506
    %v1585 = vpack.c.b16 %v1509, %v1508
    %v1586 = vpack.c.b16 %v1511, %v1510
    %v1587 = vpack.c.b16 %v1513, %v1512
    %v1588 = vpack.c.b16 %v1515, %v1514
    %v1589 = vpack.c.b16 %v1517, %v1516
    %v1590 = vpack.c.b16 %v1519, %v1518
    %v1591 = vpack.c.b16 %v1521, %v1520
    %v1592 = vpack.c.b16 %v1523, %v1522
    %v1593 = vpack.c.b16 %v1525, %v1524
    %v1594 = vpack.c.b16 %v1527, %v1526
    %v1595 = vpack.c.b16 %v1529, %v1528
    %v1596 = vpack.c.b16 %v1531, %v1530
    %v1597 = vpack.c.b16 %v1533, %v1532
    %v1598 = vpack.c.b16 %v1535, %v1534
    %v1599 = vpack.c.b16 %v1537, %v1536
    %v1600 = vpack.c.b16 %v1539, %v1538
    %v1601 = vpack.c.b16 %v1541, %v1540
    %v1602 = vpack.c.b16 %v1543, %v1542
    %v1603 = vpack.c.b16 %v1545, %v1544
    %v1604 = vpack.c.b16 %v1547, %v1546
    %v1605 = vpack.c.b16 %v1548, %v1548
    %vm1662 = vcmask 31744
    %v1664 = vsel %vm1662, %v1209, 0
    %vm1666 = vcmask 1041408
    %v1668 = vsel %vm1666, %v1605, 0
    %1670 = vmatprep.subr.bf16.mxu0 0
    %1671 = vmatpush1.bf16.msra.mxu0 %v1556
    %1672 = vmatprep.subr.bf16.mxu0 0
    %1673 = vmatpush1.bf16.msra.mxu0 %v1555
    %1674 = vmatprep.subr.bf16.mxu0 0
    %1675 = vmatpush1.bf16.msra.mxu0 %v1554
    %1676 = vmatprep.subr.bf16.mxu0 0
    %1677 = vmatpush1.bf16.msra.mxu0 %v1553
    %1678 = vmatprep.subr.bf16.mxu0 0
    %1679 = vmatpush1.bf16.msra.mxu0 %v1552
    %1680 = vmatprep.subr.bf16.mxu0 0
    %1681 = vmatpush1.bf16.msra.mxu0 %v1551
    %1682 = vmatprep.subr.bf16.mxu0 0
    %1683 = vmatpush1.bf16.msra.mxu0 %v1550
    %1684 = vmatprep.subr.bf16.mxu0 0
    %1685 = vmatpush1.bf16.msra.mxu0 %v1549
    %1686 = vmatprep.subr.bf16.mxu0 0
    %1687 = vmatpush2.bf16.msra.mxu0 %v1564
    %1688 = vmatprep.subr.bf16.mxu0 0
    %1689 = vmatpush2.bf16.msra.mxu0 %v1563
    %1690 = vmatprep.subr.bf16.mxu0 0
    %1691 = vmatpush2.bf16.msra.mxu0 %v1562
    %1692 = vmatprep.subr.bf16.mxu0 0
    %1693 = vmatpush2.bf16.msra.mxu0 %v1561
    %1694 = vmatprep.subr.bf16.mxu0 0
    %1695 = vmatpush2.bf16.msra.mxu0 %v1560
    %1696 = vmatprep.subr.bf16.mxu0 0
    %1697 = vmatpush2.bf16.msra.mxu0 %v1559
    %1698 = vmatprep.subr.bf16.mxu0 0
    %1699 = vmatpush2.bf16.msra.mxu0 %v1558
    %1700 = vmatprep.subr.bf16.mxu0 0
    %1701 = vmatpush2.bf16.msra.mxu0 %v1557
    %1702 = vmatprep.mubr.bf16.mxu0 %v1203
    %1703 = vmatmul.mubr.bf16.gmra.mxu0 %v1202
    %v1704 = vpop.f32.mrf.mxu0
    %v1705 = vadd.f32 0.0, %v1704
    %v1706 = vpop.f32.mrf.mxu0
    %v1707 = vpop.f32.mrf.mxu0
    %v1708 = vpop.f32.mrf.mxu0
    %1709 = vdwg.mxu0
    %1710 = vmatprep.subr.bf16.mxu0 0
    %1711 = vmatpush1.bf16.msra.mxu0 %v1572
    %1712 = vmatprep.subr.bf16.mxu0 0
    %1713 = vmatpush1.bf16.msra.mxu0 %v1571
    %1714 = vmatprep.subr.bf16.mxu0 0
    %1715 = vmatpush1.bf16.msra.mxu0 %v1570
    %1716 = vmatprep.subr.bf16.mxu0 0
    %1717 = vmatpush1.bf16.msra.mxu0 %v1569
    %1718 = vmatprep.subr.bf16.mxu0 0
    %1719 = vmatpush1.bf16.msra.mxu0 %v1568
    %1720 = vmatprep.subr.bf16.mxu0 0
    %1721 = vmatpush1.bf16.msra.mxu0 %v1567
    %1722 = vmatprep.subr.bf16.mxu0 0
    %1723 = vmatpush1.bf16.msra.mxu0 %v1566
    %1724 = vmatprep.subr.bf16.mxu0 0
    %1725 = vmatpush1.bf16.msra.mxu0 %v1565
    %1726 = vmatprep.subr.bf16.mxu0 0
    %1727 = vmatpush2.bf16.msra.mxu0 %v1580
    %1728 = vmatprep.subr.bf16.mxu0 0
    %1729 = vmatpush2.bf16.msra.mxu0 %v1579
    %1730 = vmatprep.subr.bf16.mxu0 0
    %1731 = vmatpush2.bf16.msra.mxu0 %v1578
    %1732 = vmatprep.subr.bf16.mxu0 0
    %1733 = vmatpush2.bf16.msra.mxu0 %v1577
    %1734 = vmatprep.subr.bf16.mxu0 0
    %1735 = vmatpush2.bf16.msra.mxu0 %v1576
    %1736 = vmatprep.subr.bf16.mxu0 0
    %1737 = vmatpush2.bf16.msra.mxu0 %v1575
    %1738 = vmatprep.subr.bf16.mxu0 0
    %1739 = vmatpush2.bf16.msra.mxu0 %v1574
    %1740 = vmatprep.subr.bf16.mxu0 0
    %1741 = vmatpush2.bf16.msra.mxu0 %v1573
    %1742 = vmatprep.mubr.bf16.mxu0 %v1205
    %1743 = vmatmul.mubr.bf16.gmra.mxu0 %v1204
    %v1744 = vpop.f32.mrf.mxu0
    %v1745 = vadd.f32 %v1705, %v1744
    %v1746 = vpop.f32.mrf.mxu0
    %v1747 = vpop.f32.mrf.mxu0
    %v1748 = vpop.f32.mrf.mxu0
    %1749 = vdwg.mxu0
    %1750 = vmatprep.subr.bf16.mxu0 0
    %1751 = vmatpush1.bf16.msra.mxu0 %v1588
    %1752 = vmatprep.subr.bf16.mxu0 0
    %1753 = vmatpush1.bf16.msra.mxu0 %v1587
    %1754 = vmatprep.subr.bf16.mxu0 0
    %1755 = vmatpush1.bf16.msra.mxu0 %v1586
    %1756 = vmatprep.subr.bf16.mxu0 0
    %1757 = vmatpush1.bf16.msra.mxu0 %v1585
    %1758 = vmatprep.subr.bf16.mxu0 0
    %1759 = vmatpush1.bf16.msra.mxu0 %v1584
    %1760 = vmatprep.subr.bf16.mxu0 0
    %1761 = vmatpush1.bf16.msra.mxu0 %v1583
    %1762 = vmatprep.subr.bf16.mxu0 0
    %1763 = vmatpush1.bf16.msra.mxu0 %v1582
    %1764 = vmatprep.subr.bf16.mxu0 0
    %1765 = vmatpush1.bf16.msra.mxu0 %v1581
    %1766 = vmatprep.subr.bf16.mxu0 0
    %1767 = vmatpush2.bf16.msra.mxu0 %v1596
    %1768 = vmatprep.subr.bf16.mxu0 0
    %1769 = vmatpush2.bf16.msra.mxu0 %v1595
    %1770 = vmatprep.subr.bf16.mxu0 0
    %1771 = vmatpush2.bf16.msra.mxu0 %v1594
    %1772 = vmatprep.subr.bf16.mxu0 0
    %1773 = vmatpush2.bf16.msra.mxu0 %v1593
    %1774 = vmatprep.subr.bf16.mxu0 0
    %1775 = vmatpush2.bf16.msra.mxu0 %v1592
    %1776 = vmatprep.subr.bf16.mxu0 0
    %1777 = vmatpush2.bf16.msra.mxu0 %v1591
    %1778 = vmatprep.subr.bf16.mxu0 0
    %1779 = vmatpush2.bf16.msra.mxu0 %v1590
    %1780 = vmatprep.subr.bf16.mxu0 0
    %1781 = vmatpush2.bf16.msra.mxu0 %v1589
    %1782 = vmatprep.mubr.bf16.mxu0 %v1207
    %1783 = vmatmul.mubr.bf16.gmra.mxu0 %v1206
    %v1784 = vpop.f32.mrf.mxu0
    %v1785 = vadd.f32 %v1745, %v1784
    %v1786 = vpop.f32.mrf.mxu0
    %v1787 = vpop.f32.mrf.mxu0
    %v1788 = vpop.f32.mrf.mxu0
    %1789 = vdwg.mxu0
    %1790 = vmatprep.subr.bf16.mxu0 0
    %1791 = vmatpush1.bf16.msra.mxu0 %v1604
    %1792 = vmatprep.subr.bf16.mxu0 0
    %1793 = vmatpush1.bf16.msra.mxu0 %v1603
    %1794 = vmatprep.subr.bf16.mxu0 0
    %1795 = vmatpush1.bf16.msra.mxu0 %v1602
    %1796 = vmatprep.subr.bf16.mxu0 0
    %1797 = vmatpush1.bf16.msra.mxu0 %v1601
    %1798 = vmatprep.subr.bf16.mxu0 0
    %1799 = vmatpush1.bf16.msra.mxu0 %v1600
    %1800 = vmatprep.subr.bf16.mxu0 0
    %1801 = vmatpush1.bf16.msra.mxu0 %v1599
    %1802 = vmatprep.subr.bf16.mxu0 0
    %1803 = vmatpush1.bf16.msra.mxu0 %v1598
    %1804 = vmatprep.subr.bf16.mxu0 0
    %1805 = vmatpush1.bf16.msra.mxu0 %v1597
    %1806 = vmatprep.subr.bf16.mxu0 0
    %1807 = vmatpush2.bf16.msra.mxu0 0
    %1808 = vmatprep.subr.bf16.mxu0 0
    %1809 = vmatpush2.bf16.msra.mxu0 0
    %1810 = vmatprep.subr.bf16.mxu0 0
    %1811 = vmatpush2.bf16.msra.mxu0 0
    %1812 = vmatprep.subr.bf16.mxu0 0
    %1813 = vmatpush2.bf16.msra.mxu0 0
    %1814 = vmatprep.subr.bf16.mxu0 0
    %1815 = vmatpush2.bf16.msra.mxu0 0
    %1816 = vmatprep.subr.bf16.mxu0 0
    %1817 = vmatpush2.bf16.msra.mxu0 0
    %1818 = vmatprep.subr.bf16.mxu0 0
    %1819 = vmatpush2.bf16.msra.mxu0 0
    %1820 = vmatprep.subr.bf16.mxu0 0
    %1821 = vmatpush2.bf16.msra.mxu0 %v1668
    %1822 = vmatprep.mubr.bf16.mxu0 %v1664
    %1823 = vmatmul.mubr.bf16.gmra.mxu0 %v1208
    %v1824 = vpop.f32.mrf.mxu0
    %v1825 = vadd.f32 %v1785, %v1824
    %v1826 = vpop.f32.mrf.mxu0
    %v1827 = vpop.f32.mrf.mxu0
    %v1828 = vpop.f32.mrf.mxu0
    %1829 = vdwg.mxu0
    %v1830 = vmax.f32 %v1825, 0.0
    %v1831 = vpack.c.bf16 %v1830, %v1830
    %v1832 = vld [vmem:[%s7] sm:$0xf]
    %v1833 = vld [vmem:[%s7 + $0x4] sm:$0xf]
    %v1834 = vld [vmem:[%s7 + $0x8] sm:$0xf]
    %v1835 = vld [vmem:[%s7 + $0xc] sm:$0xf]
    %v1836 = vld [vmem:[%s7 + $0x10] sm:$0xf]
    %v1837 = vld [vmem:[%s7 + $0x14] sm:$0xf]
    %v1838 = vld [vmem:[%s7 + $0x18] sm:$0xf]
    %v1839 = vld [vmem:[%s7 + $0x1c] sm:$0xf]
    %v1840 = vld [vmem:[%s7 + $0x20] sm:$0xf]
    %v1841 = vld [vmem:[%s7 + $0x24] sm:$0xf]
    %v1842 = vld [vmem:[%s7 + $0x28] sm:$0xf]
    %v1843 = vld [vmem:[%s7 + $0x2c] sm:$0xf]
    %v1844 = vld [vmem:[%s7 + $0x30] sm:$0xf]
    %v1845 = vld [vmem:[%s7 + $0x34] sm:$0xf]
    %v1846 = vld [vmem:[%s7 + $0x38] sm:$0xf]
    %v1847 = vld [vmem:[%s7 + $0x3c] sm:$0xf]
    %v1848 = vld [vmem:[%s8] sm:$0x1]
    %v1850 = vlaneseq
    %v1851 = vshrl.u32 %v1850, 7
    %v1852 = vsub.s32 0, %v1851
    %v1853 = vrot.slane %v1848, %v1852
    %v1871 = vunpack.c.l.b16 %v1832
    %v1872 = vunpack.c.l.b16 %v1833
    %v1873 = vunpack.c.l.b16 %v1834
    %v1874 = vunpack.c.l.b16 %v1835
    %v1875 = vunpack.c.l.b16 %v1836
    %v1876 = vunpack.c.l.b16 %v1837
    %v1877 = vunpack.c.l.b16 %v1838
    %v1878 = vunpack.c.l.b16 %v1839
    %v1879 = vunpack.c.l.b16 %v1840
    %v1880 = vunpack.c.l.b16 %v1841
    %v1881 = vunpack.c.l.b16 %v1842
    %v1882 = vunpack.c.l.b16 %v1843
    %v1883 = vunpack.c.l.b16 %v1844
    %v1884 = vunpack.c.l.b16 %v1845
    %v1885 = vunpack.c.l.b16 %v1846
    %v1886 = vunpack.c.l.b16 %v1847
    %v1887 = vpack.c.b16 %v1872, %v1871
    %v1888 = vpack.c.b16 %v1874, %v1873
    %v1889 = vpack.c.b16 %v1876, %v1875
    %v1890 = vpack.c.b16 %v1878, %v1877
    %v1891 = vpack.c.b16 %v1880, %v1879
    %v1892 = vpack.c.b16 %v1882, %v1881
    %v1893 = vpack.c.b16 %v1884, %v1883
    %v1894 = vpack.c.b16 %v1886, %v1885
    %1903 = vmatprep.subr.bf16.mxu0 0
    %1904 = vmatpush1.bf16.msra.mxu0 %v1894
    %1905 = vmatprep.subr.bf16.mxu0 0
    %1906 = vmatpush1.bf16.msra.mxu0 %v1893
    %1907 = vmatprep.subr.bf16.mxu0 0
    %1908 = vmatpush1.bf16.msra.mxu0 %v1892
    %1909 = vmatprep.subr.bf16.mxu0 0
    %1910 = vmatpush1.bf16.msra.mxu0 %v1891
    %1911 = vmatprep.subr.bf16.mxu0 0
    %1912 = vmatpush1.bf16.msra.mxu0 %v1890
    %1913 = vmatprep.subr.bf16.mxu0 0
    %1914 = vmatpush1.bf16.msra.mxu0 %v1889
    %1915 = vmatprep.subr.bf16.mxu0 0
    %1916 = vmatpush1.bf16.msra.mxu0 %v1888
    %1917 = vmatprep.subr.bf16.mxu0 0
    %1918 = vmatpush1.bf16.msra.mxu0 %v1887
    %1919 = vmatprep.subr.bf16.mxu0 0
    %1920 = vmatpush2.bf16.msra.mxu0 0
    %1921 = vmatprep.subr.bf16.mxu0 0
    %1922 = vmatpush2.bf16.msra.mxu0 0
    %1923 = vmatprep.subr.bf16.mxu0 0
    %1924 = vmatpush2.bf16.msra.mxu0 0
    %1925 = vmatprep.subr.bf16.mxu0 0
    %1926 = vmatpush2.bf16.msra.mxu0 0
    %1927 = vmatprep.subr.bf16.mxu0 0
    %1928 = vmatpush2.bf16.msra.mxu0 0
    %1929 = vmatprep.subr.bf16.mxu0 0
    %1930 = vmatpush2.bf16.msra.mxu0 0
    %1931 = vmatprep.subr.bf16.mxu0 0
    %1932 = vmatpush2.bf16.msra.mxu0 0
    %1933 = vmatprep.subr.bf16.mxu0 0
    %1934 = vmatpush2.bf16.msra.mxu0 0
    %1935 = vmatprep.mubr.bf16.mxu0 0
    %1936 = vmatmul.mubr.bf16.gmra.mxu0 %v1831
    %v1937 = vpop.f32.mrf.mxu0
    %v1938 = vadd.f32 %v1853, %v1937
    %v1939 = vpop.f32.mrf.mxu0
    %v1940 = vpop.f32.mrf.mxu0
    %v1941 = vpop.f32.mrf.mxu0
    %1942 = vdwg.mxu0
    %v1943 = vmax.f32 %v1938, 0.0
    %v1944 = vld [vmem:[#allocation5] sm:$0xff]
    %v1946 = vcombine.high %v1944, %v1944
    %v1948 = vunpack.c.l.s4 1983009808
    %v1949 = vunpack.c.0.s8 %v1948
    %v1950 = vlaneseq
    %v1951 = vshrl.u32 %v1950, 7
    %v1952 = vsub.s32 %v1949, %v1951
    %v1953 = vrot.slane %v1944, %v1952
    %v1955 = vunpack.c.l.s4 1983009808
    %v1956 = vunpack.c.0.s8 %v1955
    %v1957 = vlaneseq
    %v1958 = vshrl.u32 %v1957, 7
    %v1959 = vsub.s32 %v1956, %v1958
    %v1960 = vrot.slane %v1946, %v1959
    %v1961 = vcombine.high %v1953, %v1953
    %v1962 = vcombine.high %v1960, %v1960
    %v1967 = vpack.c.bf16 %v1953, %v1953
    %v1968 = vpack.c.bf16 %v1961, %v1961
    %v1969 = vpack.c.bf16 %v1960, %v1960
    %v1970 = vpack.c.bf16 %v1962, %v1962
    %v1971 = vld [vmem:[#allocation7] sm:$0xf]
    %v1972 = vld [vmem:[#allocation7 + $0x4] sm:$0xf]
    %v1973 = vld [vmem:[#allocation7 + $0x8] sm:$0xf]
    %v1974 = vld [vmem:[#allocation7 + $0xc] sm:$0xf]
    %v1975 = vld [vmem:[#allocation7 + $0x10] sm:$0xf]
    %v1976 = vld [vmem:[#allocation7 + $0x14] sm:$0xf]
    %v1977 = vld [vmem:[#allocation7 + $0x18] sm:$0xf]
    %v1978 = vld [vmem:[#allocation7 + $0x1c] sm:$0xf]
    %v1979 = vld [vmem:[#allocation7 + $0x20] sm:$0xf]
    %v1980 = vld [vmem:[#allocation7 + $0x24] sm:$0xf]
    %v1981 = vld [vmem:[#allocation7 + $0x28] sm:$0xf]
    %v1982 = vld [vmem:[#allocation7 + $0x2c] sm:$0xf]
    %v1983 = vld [vmem:[#allocation7 + $0x30] sm:$0xf]
    %v1984 = vld [vmem:[#allocation7 + $0x34] sm:$0xf]
    %v1985 = vld [vmem:[#allocation7 + $0x38] sm:$0xf]
    %v1986 = vld [vmem:[#allocation7 + $0x3c] sm:$0xf]
    %v1987 = vld [vmem:[#allocation7 + $0x40] sm:$0xf]
    %v1988 = vld [vmem:[#allocation7 + $0x44] sm:$0xf]
    %v1989 = vld [vmem:[#allocation7 + $0x48] sm:$0xf]
    %v1990 = vld [vmem:[#allocation7 + $0x4c] sm:$0xf]
    %v1991 = vld [vmem:[#allocation7 + $0x50] sm:$0xf]
    %v1992 = vld [vmem:[#allocation7 + $0x54] sm:$0xf]
    %v1993 = vld [vmem:[#allocation7 + $0x58] sm:$0xf]
    %v1994 = vld [vmem:[#allocation7 + $0x5c] sm:$0xf]
    %v1995 = vld [vmem:[#allocation7 + $0x60] sm:$0xf]
    %v1996 = vld [vmem:[#allocation7 + $0x64] sm:$0xf]
    %v1997 = vld [vmem:[#allocation7 + $0x68] sm:$0xf]
    %v1998 = vld [vmem:[#allocation7 + $0x6c] sm:$0xf]
    %v1999 = vld [vmem:[#allocation7 + $0x70] sm:$0xf]
    %v2000 = vld [vmem:[#allocation7 + $0x74] sm:$0xf]
    %v2001 = vld [vmem:[#allocation7 + $0x78] sm:$0xf]
    %v2002 = vld [vmem:[#allocation7 + $0x7c] sm:$0xf]
    %v2003 = vld [vmem:[#allocation7 + $0x80] sm:$0xf]
    %v2004 = vld [vmem:[#allocation7 + $0x84] sm:$0xf]
    %v2005 = vld [vmem:[#allocation7 + $0x88] sm:$0xf]
    %v2006 = vld [vmem:[#allocation7 + $0x8c] sm:$0xf]
    %v2007 = vld [vmem:[#allocation7 + $0x90] sm:$0xf]
    %v2008 = vld [vmem:[#allocation7 + $0x94] sm:$0xf]
    %v2009 = vld [vmem:[#allocation7 + $0x98] sm:$0xf]
    %v2010 = vld [vmem:[#allocation7 + $0x9c] sm:$0xf]
    %v2011 = vld [vmem:[#allocation7 + $0xa0] sm:$0xf]
    %v2012 = vld [vmem:[#allocation7 + $0xa4] sm:$0xf]
    %v2013 = vld [vmem:[#allocation7 + $0xa8] sm:$0xf]
    %v2014 = vld [vmem:[#allocation7 + $0xac] sm:$0xf]
    %v2015 = vld [vmem:[#allocation7 + $0xb0] sm:$0xf]
    %v2016 = vld [vmem:[#allocation7 + $0xb4] sm:$0xf]
    %v2017 = vld [vmem:[#allocation7 + $0xb8] sm:$0xf]
    %v2018 = vld [vmem:[#allocation7 + $0xbc] sm:$0xf]
    %v2019 = vld [vmem:[#allocation7 + $0xc0] sm:$0xf]
    %v2020 = vld [vmem:[#allocation7 + $0xc4] sm:$0xf]
    %v2021 = vld [vmem:[#allocation7 + $0xc8] sm:$0xf]
    %v2022 = vld [vmem:[#allocation7 + $0xcc] sm:$0xf]
    %v2023 = vld [vmem:[#allocation7 + $0xd0] sm:$0xf]
    %v2024 = vld [vmem:[#allocation7 + $0xd4] sm:$0xf]
    %v2025 = vld [vmem:[#allocation7 + $0xd8] sm:$0xf]
    %v2026 = vld [vmem:[#allocation7 + $0xdc] sm:$0xf]
    %v2027 = vld [vmem:[#allocation7 + $0xe0] sm:$0xf]
    %v2028 = vld [vmem:[#allocation7 + $0xe4] sm:$0xf]
    %v2029 = vld [vmem:[#allocation7 + $0xe8] sm:$0xf]
    %v2030 = vld [vmem:[#allocation7 + $0xec] sm:$0xf]
    %v2031 = vld [vmem:[#allocation7 + $0xf0] sm:$0xf]
    %v2032 = vld [vmem:[#allocation7 + $0xf4] sm:$0xf]
    %v2033 = vld [vmem:[#allocation7 + $0xf8] sm:$0x3]
    %v2097 = vunpack.c.l.b16 %v1971
    %v2098 = vunpack.c.l.b16 %v1972
    %v2099 = vunpack.c.l.b16 %v1973
    %v2100 = vunpack.c.l.b16 %v1974
    %v2101 = vunpack.c.l.b16 %v1975
    %v2102 = vunpack.c.l.b16 %v1976
    %v2103 = vunpack.c.l.b16 %v1977
    %v2104 = vunpack.c.l.b16 %v1978
    %v2105 = vunpack.c.l.b16 %v1979
    %v2106 = vunpack.c.l.b16 %v1980
    %v2107 = vunpack.c.l.b16 %v1981
    %v2108 = vunpack.c.l.b16 %v1982
    %v2109 = vunpack.c.l.b16 %v1983
    %v2110 = vunpack.c.l.b16 %v1984
    %v2111 = vunpack.c.l.b16 %v1985
    %v2112 = vunpack.c.l.b16 %v1986
    %v2113 = vunpack.c.l.b16 %v1987
    %v2114 = vunpack.c.l.b16 %v1988
    %v2115 = vunpack.c.l.b16 %v1989
    %v2116 = vunpack.c.l.b16 %v1990
    %v2117 = vunpack.c.l.b16 %v1991
    %v2118 = vunpack.c.l.b16 %v1992
    %v2119 = vunpack.c.l.b16 %v1993
    %v2120 = vunpack.c.l.b16 %v1994
    %v2121 = vunpack.c.l.b16 %v1995
    %v2122 = vunpack.c.l.b16 %v1996
    %v2123 = vunpack.c.l.b16 %v1997
    %v2124 = vunpack.c.l.b16 %v1998
    %v2125 = vunpack.c.l.b16 %v1999
    %v2126 = vunpack.c.l.b16 %v2000
    %v2127 = vunpack.c.l.b16 %v2001
    %v2128 = vunpack.c.l.b16 %v2002
    %v2129 = vunpack.c.l.b16 %v2003
    %v2130 = vunpack.c.l.b16 %v2004
    %v2131 = vunpack.c.l.b16 %v2005
    %v2132 = vunpack.c.l.b16 %v2006
    %v2133 = vunpack.c.l.b16 %v2007
    %v2134 = vunpack.c.l.b16 %v2008
    %v2135 = vunpack.c.l.b16 %v2009
    %v2136 = vunpack.c.l.b16 %v2010
    %v2137 = vunpack.c.l.b16 %v2011
    %v2138 = vunpack.c.l.b16 %v2012
    %v2139 = vunpack.c.l.b16 %v2013
    %v2140 = vunpack.c.l.b16 %v2014
    %v2141 = vunpack.c.l.b16 %v2015
    %v2142 = vunpack.c.l.b16 %v2016
    %v2143 = vunpack.c.l.b16 %v2017
    %v2144 = vunpack.c.l.b16 %v2018
    %v2145 = vunpack.c.l.b16 %v2019
    %v2146 = vunpack.c.l.b16 %v2020
    %v2147 = vunpack.c.l.b16 %v2021
    %v2148 = vunpack.c.l.b16 %v2022
    %v2149 = vunpack.c.l.b16 %v2023
    %v2150 = vunpack.c.l.b16 %v2024
    %v2151 = vunpack.c.l.b16 %v2025
    %v2152 = vunpack.c.l.b16 %v2026
    %v2153 = vunpack.c.l.b16 %v2027
    %v2154 = vunpack.c.l.b16 %v2028
    %v2155 = vunpack.c.l.b16 %v2029
    %v2156 = vunpack.c.l.b16 %v2030
    %v2157 = vunpack.c.l.b16 %v2031
    %v2158 = vunpack.c.l.b16 %v2032
    %v2159 = vunpack.c.l.b16 %v2033
    %v2160 = vpack.c.b16 %v2098, %v2097
    %v2161 = vpack.c.b16 %v2100, %v2099
    %v2162 = vpack.c.b16 %v2102, %v2101
    %v2163 = vpack.c.b16 %v2104, %v2103
    %v2164 = vpack.c.b16 %v2106, %v2105
    %v2165 = vpack.c.b16 %v2108, %v2107
    %v2166 = vpack.c.b16 %v2110, %v2109
    %v2167 = vpack.c.b16 %v2112, %v2111
    %v2168 = vpack.c.b16 %v2114, %v2113
    %v2169 = vpack.c.b16 %v2116, %v2115
    %v2170 = vpack.c.b16 %v2118, %v2117
    %v2171 = vpack.c.b16 %v2120, %v2119
    %v2172 = vpack.c.b16 %v2122, %v2121
    %v2173 = vpack.c.b16 %v2124, %v2123
    %v2174 = vpack.c.b16 %v2126, %v2125
    %v2175 = vpack.c.b16 %v2128, %v2127
    %v2176 = vpack.c.b16 %v2130, %v2129
    %v2177 = vpack.c.b16 %v2132, %v2131
    %v2178 = vpack.c.b16 %v2134, %v2133
    %v2179 = vpack.c.b16 %v2136, %v2135
    %v2180 = vpack.c.b16 %v2138, %v2137
    %v2181 = vpack.c.b16 %v2140, %v2139
    %v2182 = vpack.c.b16 %v2142, %v2141
    %v2183 = vpack.c.b16 %v2144, %v2143
    %v2184 = vpack.c.b16 %v2146, %v2145
    %v2185 = vpack.c.b16 %v2148, %v2147
    %v2186 = vpack.c.b16 %v2150, %v2149
    %v2187 = vpack.c.b16 %v2152, %v2151
    %v2188 = vpack.c.b16 %v2154, %v2153
    %v2189 = vpack.c.b16 %v2156, %v2155
    %v2190 = vpack.c.b16 %v2158, %v2157
    %v2191 = vpack.c.b16 %v2159, %v2159
    %vm2223 = vcmask 949248
    %v2225 = vsel %vm2223, %v1970, 0
    %v2228 = vsel %vm1666, %v2191, 0
    %2230 = vmatprep.subr.bf16.mxu0 0
    %2231 = vmatpush1.bf16.msra.mxu0 %v2167
    %2232 = vmatprep.subr.bf16.mxu0 0
    %2233 = vmatpush1.bf16.msra.mxu0 %v2166
    %2234 = vmatprep.subr.bf16.mxu0 0
    %2235 = vmatpush1.bf16.msra.mxu0 %v2165
    %2236 = vmatprep.subr.bf16.mxu0 0
    %2237 = vmatpush1.bf16.msra.mxu0 %v2164
    %2238 = vmatprep.subr.bf16.mxu0 0
    %2239 = vmatpush1.bf16.msra.mxu0 %v2163
    %2240 = vmatprep.subr.bf16.mxu0 0
    %2241 = vmatpush1.bf16.msra.mxu0 %v2162
    %2242 = vmatprep.subr.bf16.mxu0 0
    %2243 = vmatpush1.bf16.msra.mxu0 %v2161
    %2244 = vmatprep.subr.bf16.mxu0 0
    %2245 = vmatpush1.bf16.msra.mxu0 %v2160
    %2246 = vmatprep.subr.bf16.mxu0 0
    %2247 = vmatpush2.bf16.msra.mxu0 %v2175
    %2248 = vmatprep.subr.bf16.mxu0 0
    %2249 = vmatpush2.bf16.msra.mxu0 %v2174
    %2250 = vmatprep.subr.bf16.mxu0 0
    %2251 = vmatpush2.bf16.msra.mxu0 %v2173
    %2252 = vmatprep.subr.bf16.mxu0 0
    %2253 = vmatpush2.bf16.msra.mxu0 %v2172
    %2254 = vmatprep.subr.bf16.mxu0 0
    %2255 = vmatpush2.bf16.msra.mxu0 %v2171
    %2256 = vmatprep.subr.bf16.mxu0 0
    %2257 = vmatpush2.bf16.msra.mxu0 %v2170
    %2258 = vmatprep.subr.bf16.mxu0 0
    %2259 = vmatpush2.bf16.msra.mxu0 %v2169
    %2260 = vmatprep.subr.bf16.mxu0 0
    %2261 = vmatpush2.bf16.msra.mxu0 %v2168
    %2262 = vmatprep.mubr.bf16.mxu0 %v1968
    %2263 = vmatmul.mubr.bf16.gmra.mxu0 %v1967
    %v2264 = vpop.f32.mrf.mxu0
    %v2265 = vadd.f32 0.0, %v2264
    %v2266 = vpop.f32.mrf.mxu0
    %v2267 = vpop.f32.mrf.mxu0
    %v2268 = vpop.f32.mrf.mxu0
    %2269 = vdwg.mxu0
    %2270 = vmatprep.subr.bf16.mxu0 0
    %2271 = vmatpush1.bf16.msra.mxu0 %v2183
    %2272 = vmatprep.subr.bf16.mxu0 0
    %2273 = vmatpush1.bf16.msra.mxu0 %v2182
    %2274 = vmatprep.subr.bf16.mxu0 0
    %2275 = vmatpush1.bf16.msra.mxu0 %v2181
    %2276 = vmatprep.subr.bf16.mxu0 0
    %2277 = vmatpush1.bf16.msra.mxu0 %v2180
    %2278 = vmatprep.subr.bf16.mxu0 0
    %2279 = vmatpush1.bf16.msra.mxu0 %v2179
    %2280 = vmatprep.subr.bf16.mxu0 0
    %2281 = vmatpush1.bf16.msra.mxu0 %v2178
    %2282 = vmatprep.subr.bf16.mxu0 0
    %2283 = vmatpush1.bf16.msra.mxu0 %v2177
    %2284 = vmatprep.subr.bf16.mxu0 0
    %2285 = vmatpush1.bf16.msra.mxu0 %v2176
    %2286 = vmatprep.subr.bf16.mxu0 0
    %2287 = vmatpush2.bf16.msra.mxu0 %v2228
    %2288 = vmatprep.subr.bf16.mxu0 0
    %2289 = vmatpush2.bf16.msra.mxu0 %v2190
    %2290 = vmatprep.subr.bf16.mxu0 0
    %2291 = vmatpush2.bf16.msra.mxu0 %v2189
    %2292 = vmatprep.subr.bf16.mxu0 0
    %2293 = vmatpush2.bf16.msra.mxu0 %v2188
    %2294 = vmatprep.subr.bf16.mxu0 0
    %2295 = vmatpush2.bf16.msra.mxu0 %v2187
    %2296 = vmatprep.subr.bf16.mxu0 0
    %2297 = vmatpush2.bf16.msra.mxu0 %v2186
    %2298 = vmatprep.subr.bf16.mxu0 0
    %2299 = vmatpush2.bf16.msra.mxu0 %v2185
    %2300 = vmatprep.subr.bf16.mxu0 0
    %2301 = vmatpush2.bf16.msra.mxu0 %v2184
    %2302 = vmatprep.mubr.bf16.mxu0 %v2225
    %2303 = vmatmul.mubr.bf16.gmra.mxu0 %v1969
    %v2304 = vpop.f32.mrf.mxu0
    %v2305 = vadd.f32 %v2265, %v2304
    %v2306 = vpop.f32.mrf.mxu0
    %v2307 = vpop.f32.mrf.mxu0
    %v2308 = vpop.f32.mrf.mxu0
    %2309 = vdwg.mxu0
    %v2310 = vmax.f32 %v2305, 0.0
    %v2311 = vpack.c.bf16 %v2310, %v2310
    %v2312 = vld [vmem:[%s10] sm:$0xf]
    %v2313 = vld [vmem:[%s10 + $0x4] sm:$0xf]
    %v2314 = vld [vmem:[%s10 + $0x8] sm:$0xf]
    %v2315 = vld [vmem:[%s10 + $0xc] sm:$0xf]
    %v2316 = vld [vmem:[%s10 + $0x10] sm:$0xf]
    %v2317 = vld [vmem:[%s10 + $0x14] sm:$0xf]
    %v2318 = vld [vmem:[%s10 + $0x18] sm:$0xf]
    %v2319 = vld [vmem:[%s10 + $0x1c] sm:$0xf]
    %v2320 = vld [vmem:[%s10 + $0x20] sm:$0xf]
    %v2321 = vld [vmem:[%s10 + $0x24] sm:$0xf]
    %v2322 = vld [vmem:[%s10 + $0x28] sm:$0xf]
    %v2323 = vld [vmem:[%s10 + $0x2c] sm:$0xf]
    %v2324 = vld [vmem:[%s10 + $0x30] sm:$0xf]
    %v2325 = vld [vmem:[%s10 + $0x34] sm:$0xf]
    %v2326 = vld [vmem:[%s10 + $0x38] sm:$0xf]
    %v2327 = vld [vmem:[%s10 + $0x3c] sm:$0xf]
    %v2328 = vld [vmem:[%s11] sm:$0x1]
    %v2330 = vlaneseq
    %v2331 = vshrl.u32 %v2330, 7
    %v2332 = vsub.s32 0, %v2331
    %v2333 = vrot.slane %v2328, %v2332
    %v2351 = vunpack.c.l.b16 %v2312
    %v2352 = vunpack.c.l.b16 %v2313
    %v2353 = vunpack.c.l.b16 %v2314
    %v2354 = vunpack.c.l.b16 %v2315
    %v2355 = vunpack.c.l.b16 %v2316
    %v2356 = vunpack.c.l.b16 %v2317
    %v2357 = vunpack.c.l.b16 %v2318
    %v2358 = vunpack.c.l.b16 %v2319
    %v2359 = vunpack.c.l.b16 %v2320
    %v2360 = vunpack.c.l.b16 %v2321
    %v2361 = vunpack.c.l.b16 %v2322
    %v2362 = vunpack.c.l.b16 %v2323
    %v2363 = vunpack.c.l.b16 %v2324
    %v2364 = vunpack.c.l.b16 %v2325
    %v2365 = vunpack.c.l.b16 %v2326
    %v2366 = vunpack.c.l.b16 %v2327
    %v2367 = vpack.c.b16 %v2352, %v2351
    %v2368 = vpack.c.b16 %v2354, %v2353
    %v2369 = vpack.c.b16 %v2356, %v2355
    %v2370 = vpack.c.b16 %v2358, %v2357
    %v2371 = vpack.c.b16 %v2360, %v2359
    %v2372 = vpack.c.b16 %v2362, %v2361
    %v2373 = vpack.c.b16 %v2364, %v2363
    %v2374 = vpack.c.b16 %v2366, %v2365
    %2383 = vmatprep.subr.bf16.mxu0 0
    %2384 = vmatpush1.bf16.msra.mxu0 %v2374
    %2385 = vmatprep.subr.bf16.mxu0 0
    %2386 = vmatpush1.bf16.msra.mxu0 %v2373
    %2387 = vmatprep.subr.bf16.mxu0 0
    %2388 = vmatpush1.bf16.msra.mxu0 %v2372
    %2389 = vmatprep.subr.bf16.mxu0 0
    %2390 = vmatpush1.bf16.msra.mxu0 %v2371
    %2391 = vmatprep.subr.bf16.mxu0 0
    %2392 = vmatpush1.bf16.msra.mxu0 %v2370
    %2393 = vmatprep.subr.bf16.mxu0 0
    %2394 = vmatpush1.bf16.msra.mxu0 %v2369
    %2395 = vmatprep.subr.bf16.mxu0 0
    %2396 = vmatpush1.bf16.msra.mxu0 %v2368
    %2397 = vmatprep.subr.bf16.mxu0 0
    %2398 = vmatpush1.bf16.msra.mxu0 %v2367
    %2399 = vmatprep.subr.bf16.mxu0 0
    %2400 = vmatpush2.bf16.msra.mxu0 0
    %2401 = vmatprep.subr.bf16.mxu0 0
    %2402 = vmatpush2.bf16.msra.mxu0 0
    %2403 = vmatprep.subr.bf16.mxu0 0
    %2404 = vmatpush2.bf16.msra.mxu0 0
    %2405 = vmatprep.subr.bf16.mxu0 0
    %2406 = vmatpush2.bf16.msra.mxu0 0
    %2407 = vmatprep.subr.bf16.mxu0 0
    %2408 = vmatpush2.bf16.msra.mxu0 0
    %2409 = vmatprep.subr.bf16.mxu0 0
    %2410 = vmatpush2.bf16.msra.mxu0 0
    %2411 = vmatprep.subr.bf16.mxu0 0
    %2412 = vmatpush2.bf16.msra.mxu0 0
    %2413 = vmatprep.subr.bf16.mxu0 0
    %2414 = vmatpush2.bf16.msra.mxu0 0
    %2415 = vmatprep.mubr.bf16.mxu0 0
    %2416 = vmatmul.mubr.bf16.gmra.mxu0 %v2311
    %v2417 = vpop.f32.mrf.mxu0
    %v2418 = vadd.f32 %v2333, %v2417
    %v2419 = vpop.f32.mrf.mxu0
    %v2420 = vpop.f32.mrf.mxu0
    %v2421 = vpop.f32.mrf.mxu0
    %2422 = vdwg.mxu0
    %v2423 = vmax.f32 %v2418, 0.0
    %v2424 = vpack.c.bf16 %v1155, %v1155
    %v2425 = vld [vmem:[#allocation8] sm:$0xf]
    %v2426 = vld [vmem:[#allocation8 + $0x4] sm:$0xf]
    %v2427 = vld [vmem:[#allocation8 + $0x8] sm:$0xf]
    %v2428 = vld [vmem:[#allocation8 + $0xc] sm:$0xf]
    %v2429 = vpack.c.bf16 %v1943, %v1943
    %v2430 = vld [vmem:[#allocation10] sm:$0xf]
    %v2431 = vld [vmem:[#allocation10 + $0x4] sm:$0xf]
    %v2432 = vld [vmem:[#allocation10 + $0x8] sm:$0xf]
    %v2433 = vld [vmem:[#allocation10 + $0xc] sm:$0xf]
    %v2438 = vunpack.c.l.b16 %v2430
    %v2439 = vunpack.c.l.b16 %v2431
    %v2440 = vunpack.c.l.b16 %v2432
    %v2441 = vunpack.c.l.b16 %v2433
    %v2442 = vpack.c.b16 %v2439, %v2438
    %v2443 = vpack.c.b16 %v2441, %v2440
    %vm2446 = vcmask 261120
    %v2448 = vsel %vm2446, %v2429, 0
    %2450 = vmatprep.subr.bf16.mxu0 0
    %2451 = vmatpush1.bf16.msra.mxu0 0
    %2452 = vmatprep.subr.bf16.mxu0 0
    %2453 = vmatpush1.bf16.msra.mxu0 0
    %2454 = vmatprep.subr.bf16.mxu0 0
    %2455 = vmatpush1.bf16.msra.mxu0 0
    %2456 = vmatprep.subr.bf16.mxu0 0
    %2457 = vmatpush1.bf16.msra.mxu0 0
    %2458 = vmatprep.subr.bf16.mxu0 0
    %2459 = vmatpush1.bf16.msra.mxu0 0
    %2460 = vmatprep.subr.bf16.mxu0 0
    %2461 = vmatpush1.bf16.msra.mxu0 0
    %2462 = vmatprep.subr.bf16.mxu0 0
    %2463 = vmatpush1.bf16.msra.mxu0 %v2443
    %2464 = vmatprep.subr.bf16.mxu0 0
    %2465 = vmatpush1.bf16.msra.mxu0 %v2442
    %2466 = vmatprep.subr.bf16.mxu0 0
    %2467 = vmatpush2.bf16.msra.mxu0 0
    %2468 = vmatprep.subr.bf16.mxu0 0
    %2469 = vmatpush2.bf16.msra.mxu0 0
    %2470 = vmatprep.subr.bf16.mxu0 0
    %2471 = vmatpush2.bf16.msra.mxu0 0
    %2472 = vmatprep.subr.bf16.mxu0 0
    %2473 = vmatpush2.bf16.msra.mxu0 0
    %2474 = vmatprep.subr.bf16.mxu0 0
    %2475 = vmatpush2.bf16.msra.mxu0 0
    %2476 = vmatprep.subr.bf16.mxu0 0
    %2477 = vmatpush2.bf16.msra.mxu0 0
    %2478 = vmatprep.subr.bf16.mxu0 0
    %2479 = vmatpush2.bf16.msra.mxu0 0
    %2480 = vmatprep.subr.bf16.mxu0 0
    %2481 = vmatpush2.bf16.msra.mxu0 0
    %2482 = vmatprep.mubr.bf16.mxu0 0
    %2483 = vmatmul.mubr.bf16.gmra.mxu0 %v2448
    %v2484 = vpop.f32.mrf.mxu0
    %v2485 = vadd.f32 0.0, %v2484
    %v2486 = vpop.f32.mrf.mxu0
    %v2487 = vpop.f32.mrf.mxu0
    %v2488 = vpop.f32.mrf.mxu0
    %2489 = vdwg.mxu0
    %v2494 = vunpack.c.l.b16 %v2425
    %v2495 = vunpack.c.l.b16 %v2426
    %v2496 = vunpack.c.l.b16 %v2427
    %v2497 = vunpack.c.l.b16 %v2428
    %v2498 = vpack.c.b16 %v2495, %v2494
    %v2499 = vpack.c.b16 %v2497, %v2496
    %v2503 = vsel %vm2446, %v2424, 0
    %2505 = vmatprep.subr.bf16.mxu0 0
    %2506 = vmatpush1.bf16.msra.mxu0 0
    %2507 = vmatprep.subr.bf16.mxu0 0
    %2508 = vmatpush1.bf16.msra.mxu0 0
    %2509 = vmatprep.subr.bf16.mxu0 0
    %2510 = vmatpush1.bf16.msra.mxu0 0
    %2511 = vmatprep.subr.bf16.mxu0 0
    %2512 = vmatpush1.bf16.msra.mxu0 0
    %2513 = vmatprep.subr.bf16.mxu0 0
    %2514 = vmatpush1.bf16.msra.mxu0 0
    %2515 = vmatprep.subr.bf16.mxu0 0
    %2516 = vmatpush1.bf16.msra.mxu0 0
    %2517 = vmatprep.subr.bf16.mxu0 0
    %2518 = vmatpush1.bf16.msra.mxu0 %v2499
    %2519 = vmatprep.subr.bf16.mxu0 0
    %2520 = vmatpush1.bf16.msra.mxu0 %v2498
    %2521 = vmatprep.subr.bf16.mxu0 0
    %2522 = vmatpush2.bf16.msra.mxu0 0
    %2523 = vmatprep.subr.bf16.mxu0 0
    %2524 = vmatpush2.bf16.msra.mxu0 0
    %2525 = vmatprep.subr.bf16.mxu0 0
    %2526 = vmatpush2.bf16.msra.mxu0 0
    %2527 = vmatprep.subr.bf16.mxu0 0
    %2528 = vmatpush2.bf16.msra.mxu0 0
    %2529 = vmatprep.subr.bf16.mxu0 0
    %2530 = vmatpush2.bf16.msra.mxu0 0
    %2531 = vmatprep.subr.bf16.mxu0 0
    %2532 = vmatpush2.bf16.msra.mxu0 0
    %2533 = vmatprep.subr.bf16.mxu0 0
    %2534 = vmatpush2.bf16.msra.mxu0 0
    %2535 = vmatprep.subr.bf16.mxu0 0
    %2536 = vmatpush2.bf16.msra.mxu0 0
    %2537 = vmatprep.mubr.bf16.mxu0 0
    %2538 = vmatmul.mubr.bf16.gmra.mxu0 %v2503
    %v2539 = vpop.f32.mrf.mxu0
    %v2540 = vadd.f32 %v2485, %v2539
    %v2541 = vpop.f32.mrf.mxu0
    %v2542 = vpop.f32.mrf.mxu0
    %v2543 = vpop.f32.mrf.mxu0
    %2544 = vdwg.mxu0
    %v2545 = vpack.c.bf16 %v2423, %v2423
    %v2546 = vld [vmem:[#allocation11] sm:$0xf]
    %v2547 = vld [vmem:[#allocation11 + $0x4] sm:$0xf]
    %v2548 = vld [vmem:[#allocation11 + $0x8] sm:$0xf]
    %v2549 = vld [vmem:[#allocation11 + $0xc] sm:$0xf]
    %v2554 = vunpack.c.l.b16 %v2546
    %v2555 = vunpack.c.l.b16 %v2547
    %v2556 = vunpack.c.l.b16 %v2548
    %v2557 = vunpack.c.l.b16 %v2549
    %v2558 = vpack.c.b16 %v2555, %v2554
    %v2559 = vpack.c.b16 %v2557, %v2556
    %v2563 = vsel %vm2446, %v2545, 0
    %2565 = vmatprep.subr.bf16.mxu0 0
    %2566 = vmatpush1.bf16.msra.mxu0 0
    %2567 = vmatprep.subr.bf16.mxu0 0
    %2568 = vmatpush1.bf16.msra.mxu0 0
    %2569 = vmatprep.subr.bf16.mxu0 0
    %2570 = vmatpush1.bf16.msra.mxu0 0
    %2571 = vmatprep.subr.bf16.mxu0 0
    %2572 = vmatpush1.bf16.msra.mxu0 0
    %2573 = vmatprep.subr.bf16.mxu0 0
    %2574 = vmatpush1.bf16.msra.mxu0 0
    %2575 = vmatprep.subr.bf16.mxu0 0
    %2576 = vmatpush1.bf16.msra.mxu0 0
    %2577 = vmatprep.subr.bf16.mxu0 0
    %2578 = vmatpush1.bf16.msra.mxu0 %v2559
    %2579 = vmatprep.subr.bf16.mxu0 0
    %2580 = vmatpush1.bf16.msra.mxu0 %v2558
    %2581 = vmatprep.subr.bf16.mxu0 0
    %2582 = vmatpush2.bf16.msra.mxu0 0
    %2583 = vmatprep.subr.bf16.mxu0 0
    %2584 = vmatpush2.bf16.msra.mxu0 0
    %2585 = vmatprep.subr.bf16.mxu0 0
    %2586 = vmatpush2.bf16.msra.mxu0 0
    %2587 = vmatprep.subr.bf16.mxu0 0
    %2588 = vmatpush2.bf16.msra.mxu0 0
    %2589 = vmatprep.subr.bf16.mxu0 0
    %2590 = vmatpush2.bf16.msra.mxu0 0
    %2591 = vmatprep.subr.bf16.mxu0 0
    %2592 = vmatpush2.bf16.msra.mxu0 0
    %2593 = vmatprep.subr.bf16.mxu0 0
    %2594 = vmatpush2.bf16.msra.mxu0 0
    %2595 = vmatprep.subr.bf16.mxu0 0
    %2596 = vmatpush2.bf16.msra.mxu0 0
    %2597 = vmatprep.mubr.bf16.mxu0 0
    %2598 = vmatmul.mubr.bf16.gmra.mxu0 %v2563
    %v2599 = vpop.f32.mrf.mxu0
    %v2600 = vadd.f32 0.0, %v2599
    %v2601 = vpop.f32.mrf.mxu0
    %v2602 = vpop.f32.mrf.mxu0
    %v2603 = vpop.f32.mrf.mxu0
    %2604 = vdwg.mxu0
    %v2605 = vadd.f32 %v2540, %v2600
    %v2606 = vld [vmem:[#allocation13] sm:$0x1]
    %v2608 = vlaneseq
    %v2609 = vshrl.u32 %v2608, 7
    %v2610 = vsub.s32 0, %v2609
    %v2611 = vrot.slane %v2606, %v2610
    %v2613 = vadd.f32 %v2605, %v2611
    %v2614 = vmax.f32 %v2613, 0.0
    %v2615 = vpack.c.bf16 %v2614, %v2614
    %v2616 = vld [vmem:[%s16] sm:$0xf]
    %v2617 = vld [vmem:[%s16 + $0x4] sm:$0xf]
    %v2618 = vld [vmem:[%s16 + $0x8] sm:$0xf]
    %v2619 = vld [vmem:[%s16 + $0xc] sm:$0xf]
    %v2620 = vld [vmem:[%s16 + $0x10] sm:$0xf]
    %v2621 = vld [vmem:[%s16 + $0x14] sm:$0xf]
    %v2622 = vld [vmem:[%s16 + $0x18] sm:$0xf]
    %v2623 = vld [vmem:[%s16 + $0x1c] sm:$0xf]
    %v2624 = vld [vmem:[#allocation14] sm:$0x1]
    %v2626 = vlaneseq
    %v2627 = vshrl.u32 %v2626, 7
    %v2628 = vsub.s32 0, %v2627
    %v2629 = vrot.slane %v2624, %v2628
    %v2639 = vunpack.c.l.b16 %v2616
    %v2640 = vunpack.c.l.b16 %v2617
    %v2641 = vunpack.c.l.b16 %v2618
    %v2642 = vunpack.c.l.b16 %v2619
    %v2643 = vunpack.c.l.b16 %v2620
    %v2644 = vunpack.c.l.b16 %v2621
    %v2645 = vunpack.c.l.b16 %v2622
    %v2646 = vunpack.c.l.b16 %v2623
    %v2647 = vpack.c.b16 %v2640, %v2639
    %v2648 = vpack.c.b16 %v2642, %v2641
    %v2649 = vpack.c.b16 %v2644, %v2643
    %v2650 = vpack.c.b16 %v2646, %v2645
    %vm2655 = vcmask 523264
    %v2657 = vsel %vm2655, %v2615, 0
    %2659 = vmatprep.subr.bf16.mxu0 0
    %2660 = vmatpush1.bf16.msra.mxu0 0
    %2661 = vmatprep.subr.bf16.mxu0 0
    %2662 = vmatpush1.bf16.msra.mxu0 0
    %2663 = vmatprep.subr.bf16.mxu0 0
    %2664 = vmatpush1.bf16.msra.mxu0 0
    %2665 = vmatprep.subr.bf16.mxu0 0
    %2666 = vmatpush1.bf16.msra.mxu0 0
    %2667 = vmatprep.subr.bf16.mxu0 0
    %2668 = vmatpush1.bf16.msra.mxu0 %v2650
    %2669 = vmatprep.subr.bf16.mxu0 0
    %2670 = vmatpush1.bf16.msra.mxu0 %v2649
    %2671 = vmatprep.subr.bf16.mxu0 0
    %2672 = vmatpush1.bf16.msra.mxu0 %v2648
    %2673 = vmatprep.subr.bf16.mxu0 0
    %2674 = vmatpush1.bf16.msra.mxu0 %v2647
    %2675 = vmatprep.subr.bf16.mxu0 0
    %2676 = vmatpush2.bf16.msra.mxu0 0
    %2677 = vmatprep.subr.bf16.mxu0 0
    %2678 = vmatpush2.bf16.msra.mxu0 0
    %2679 = vmatprep.subr.bf16.mxu0 0
    %2680 = vmatpush2.bf16.msra.mxu0 0
    %2681 = vmatprep.subr.bf16.mxu0 0
    %2682 = vmatpush2.bf16.msra.mxu0 0
    %2683 = vmatprep.subr.bf16.mxu0 0
    %2684 = vmatpush2.bf16.msra.mxu0 0
    %2685 = vmatprep.subr.bf16.mxu0 0
    %2686 = vmatpush2.bf16.msra.mxu0 0
    %2687 = vmatprep.subr.bf16.mxu0 0
    %2688 = vmatpush2.bf16.msra.mxu0 0
    %2689 = vmatprep.subr.bf16.mxu0 0
    %2690 = vmatpush2.bf16.msra.mxu0 0
    %2691 = vmatprep.mubr.bf16.mxu0 0
    %2692 = vmatmul.mubr.bf16.gmra.mxu0 %v2657
    %v2693 = vpop.f32.mrf.mxu0
    %v2694 = vadd.f32 %v2629, %v2693
    %v2695 = vpop.f32.mrf.mxu0
    %v2696 = vpop.f32.mrf.mxu0
    %v2697 = vpop.f32.mrf.mxu0
    %2698 = vdwg.mxu0
    %v2699 = vmul.f32 %v2694, %v2694
    %vm2700 = vcmask 517120
    %v2701 = vsel %vm2700, %v2699, 0.0
    %2702 = vadd.xlane.f32.xlu0 %v2701
    %v2703 = vpop.xlane.xlu0 %2702
    %v2704 = vmax.f32 %v2703, 1e-24
    %v2705 = vrsqrt.pop %v2704
    %v2706 = vmul.f32 %v2694, %v2705
    %2707 = vst.msk [vmem:[#allocation16] sm:$0x3] %vm2700, %v2706
    // Predicated region
    $region106: #{proprioception_forward.1} parent=1 // pred_check
      _
    $region107: #{proprioception_forward.1} parent=1 // pred_check_branch
      %2709 = sbr.rel (0) target = $region109
    $region108: #{proprioception_forward.1} parent=1 // pred_region
      %s2711 = ssub.s32 32, 32
      %2712 = vsyncadd [#allocation4], %s2711
      %s2714 = sshll.u32 [#allocation16], 4
      %s2715 = int_to_ptr.vmem [resolvable:$true] %s2714
      %2717 = dma.vmem_to_hbm [thread:$0]  %s2715, 32, %s18, [#allocation4]
    $region109: #{proprioception_forward.1} parent=1 // pred_fallthru
      _
    // Predicated region
    $region110: #{proprioception_forward.1} parent=1 // pred_check
      _
    $region111: #{proprioception_forward.1} parent=1 // pred_check_branch
      %2719 = sbr.rel (0) target = $region113
    $region112: #{proprioception_forward.1} parent=1 // pred_region
      %2720 = dma.done [#allocation4], 32
    $region113: #{proprioception_forward.1} parent=1 // pred_fallthru
      _
    %2721 = vsyncpa [#allocation3], 1
    %2722 = vsyncpa [#allocation6], 1
    %2723 = vsyncpa [#allocation9], 1
    %2724 = vsyncpa [#allocation12], 1
    %2725 = vsyncpa [#allocation15], 1
    %2726 = vsyncpa [#allocation4], 1

</llo_original>
